<compile_context>
chip_gen: v7x
topology: tpu7x:2x2x1
jax: 0.10.0
libtpu: 0.0.40
codegen_flags: <defaults>
</compile_context>

<pallas_src>
import functools

import jax
import jax.numpy as jnp
from jax import lax
from jax.experimental import pallas as pl
from jax.experimental.pallas import tpu as pltpu


def _dsconv_kernel(x_ref, wdw_ref, bdw_ref, wpw_ref, bpw_ref, o_ref, flat_ref,
                   *, K, S, H_out, W_out, neg_slope, use_activation):
    # x_ref:    (1, C, H_pad, W_pad)    padded input planes for one image
    # wdw_ref:  (C, K, K)               depthwise weights
    # bdw_ref:  (C, 1)                  depthwise bias
    # wpw_ref:  (C_out, C)              pointwise (1x1) weights
    # bpw_ref:  (C_out, 1)              pointwise bias
    # o_ref:    (1, C_out, H_out*W_out) lane-dense output tile
    # flat_ref: VMEM scratch (C, H_out*W_out) flattening spatial -> lanes
    x = x_ref[0].astype(jnp.float32)          # (C, H_pad, W_pad)
    wdw = wdw_ref[...].astype(jnp.float32)    # (C, K, K)

    # ---- depthwise KxK conv: channel-vectorized, fully unrolled tap loop ----
    acc = None
    for kh in range(K):
        for kw in range(K):
            if S == 1:
                win = x[:, kh:kh + H_out, kw:kw + W_out]
            else:
                # TODO(synk): stride>1 uses a strided register slice; only the
                # stride=1 path is exercised by the demo below.
                win = x[:, kh:kh + S * (H_out - 1) + 1:S,
                        kw:kw + S * (W_out - 1) + 1:S]
            tap = win * wdw[:, kh:kh + 1, kw:kw + 1]      # (C,1,1) broadcast
            acc = tap if acc is None else acc + tap       # (C, H_out, W_out)

    # ---- flatten spatial onto the lane axis via VMEM scratch (static row
    #      stores; avoids an in-register (C,H,W)->(C,H*W) relayout) ----
    for i in range(H_out):
        flat_ref[:, i * W_out:(i + 1) * W_out] = acc[:, i, :]
    dw = flat_ref[...]                                    # (C, H*W), lane-dense

    # bias + LeakyReLU on the compact lane-dense form (fewer padded vregs).
    dw = dw + bdw_ref[...]                                # (C,1) broadcast
    if use_activation:
        dw = jnp.where(dw >= 0, dw, neg_slope * dw)       # LeakyReLU(0.01)

    # ---- pointwise 1x1 conv as a lane-dense MXU matmul ----
    out = jnp.dot(wpw_ref[...].astype(jnp.float32), dw,
                  preferred_element_type=jnp.float32,
                  precision=lax.Precision.HIGHEST)        # (C_out, H*W)
    out = out + bpw_ref[...]                              # (C_out,1) broadcast
    if use_activation:
        out = jnp.where(out >= 0, out, neg_slope * out)   # LeakyReLU(0.01)
    o_ref[0] = out.astype(o_ref.dtype)


def dsconv_forward(x, w_dw, b_dw, w_pw, b_pw, *, stride, padding,
                   use_activation=True, neg_slope=0.01):
    """Fused depthwise-separable conv (NCHW in/out):
       depthwise KxK (groups=C) + bias [+LeakyReLU] -> 1x1 conv + bias [+LeakyReLU].
    """
    N, C, H, W = x.shape
    K = w_dw.shape[-1]
    C_out = w_pw.shape[0]
    H_out = (H + 2 * padding - K) // stride + 1
    W_out = (W + 2 * padding - K) // stride + 1
    HW = H_out * W_out

    # Only the small halo is padded in XLA; everything else runs inside one
    # fused Pallas kernel (no inflated / zero-dilated intermediates in HBM).
    x_pad = jnp.pad(x, ((0, 0), (0, 0), (padding, padding), (padding, padding)))
    H_pad, W_pad = H + 2 * padding, W + 2 * padding

    wdw = w_dw.reshape(C, K, K).astype(jnp.float32)
    bdw = b_dw.reshape(C, 1).astype(jnp.float32)
    wpw = w_pw.reshape(C_out, C).astype(jnp.float32)
    bpw = b_pw.reshape(C_out, 1).astype(jnp.float32)

    kernel = functools.partial(
        _dsconv_kernel, K=K, S=stride, H_out=H_out, W_out=W_out,
        neg_slope=neg_slope, use_activation=use_activation)

    flops = (2 * N * C * H_out * W_out * K * K          # depthwise MACs
             + 2 * N * C_out * C * H_out * W_out)       # pointwise MACs
    bytes_accessed = 4 * (x_pad.size + wdw.size + bdw.size + wpw.size
                          + bpw.size + N * C_out * HW)

    out_flat = pl.pallas_call(
        kernel,
        out_shape=jax.ShapeDtypeStruct((N, C_out, HW), x.dtype),
        grid_spec=pltpu.PrefetchScalarGridSpec(
            num_scalar_prefetch=0,
            grid=(N,),
            in_specs=[
                pl.BlockSpec((1, C, H_pad, W_pad), lambda n: (n, 0, 0, 0)),
                # Weights/biases: constant block index -> fetched once, stay
                # resident in VMEM across grid steps.
                pl.BlockSpec((C, K, K), lambda n: (0, 0, 0)),
                pl.BlockSpec((C, 1), lambda n: (0, 0)),
                pl.BlockSpec((C_out, C), lambda n: (0, 0)),
                pl.BlockSpec((C_out, 1), lambda n: (0, 0)),
            ],
            out_specs=pl.BlockSpec((1, C_out, HW), lambda n: (n, 0, 0)),
            scratch_shapes=[pltpu.VMEM((C, HW), jnp.float32)],
        ),
        compiler_params=pltpu.CompilerParams(
            dimension_semantics=("parallel",)),
        cost_estimate=pl.CostEstimate(
            flops=flops, transcendentals=0, bytes_accessed=bytes_accessed),
    )(x_pad, wdw, bdw, wpw, bpw)

    # Free row-major reshape back to NCHW.
    return out_flat.reshape(N, C_out, H_out, W_out)


class DSConv:
    """JAX/Pallas port of the PyTorch DSConv (depthwise-separable conv).

    forward(x) = LeakyReLU(pointwise_1x1(LeakyReLU(depthwise_KxK(x))))
    with the default use_bn=False the BatchNorm branches are identity.
    """

    def __init__(self, in_channels, out_channels, kernel_size, stride, padding,
                 use_bn=False, use_activation=True, key=None):
        # TODO(synk): training-mode BatchNorm2d (batch statistics) not
        # implemented; only the default use_bn=False path is supported.
        assert not use_bn, "BatchNorm path not implemented"
        self.stride = stride
        self.padding = padding
        self.use_activation = use_activation

        key = jax.random.PRNGKey(0) if key is None else key
        k1, k2, k3, k4 = jax.random.split(key, 4)
        C, Co, K = in_channels, out_channels, kernel_size
        bound_dw = 1.0 / float(K * K) ** 0.5   # fan_in = (C/groups)*K*K = K*K
        bound_pw = 1.0 / float(C) ** 0.5       # fan_in = C*1*1
        # PyTorch Conv2d layouts: depthwise (C,1,K,K), pointwise (C_out,C,1,1)
        self.w_dw = jax.random.uniform(k1, (C, 1, K, K), jnp.float32,
                                       -bound_dw, bound_dw)
        self.b_dw = jax.random.uniform(k2, (C,), jnp.float32,
                                       -bound_dw, bound_dw)
        self.w_pw = jax.random.uniform(k3, (Co, C, 1, 1), jnp.float32,
                                       -bound_pw, bound_pw)
        self.b_pw = jax.random.uniform(k4, (Co,), jnp.float32,
                                       -bound_pw, bound_pw)

    def __call__(self, x):
        return dsconv_forward(x, self.w_dw, self.b_dw, self.w_pw, self.b_pw,
                              stride=self.stride, padding=self.padding,
                              use_activation=self.use_activation)


if __name__ == "__main__":
    key = jax.random.PRNGKey(0)
    kx, kp = jax.random.split(key)

    N, C, H, W = 2, 4, 16, 16
    C_out, K, S, P = 8, 3, 1, 1
    x = jax.random.normal(kx, (N, C, H, W), dtype=jnp.float32)

    mod = DSConv(C, C_out, kernel_size=K, stride=S, padding=P, key=kp)
    forward = jax.jit(lambda inp: mod(inp))   # fuses pad + kernel + reshape
    y = jax.block_until_ready(forward(x))

    # Pure-JAX reference (f32-accurate precision to match the in-kernel math).
    dw = lax.conv_general_dilated(
        x, mod.w_dw, window_strides=(S, S), padding=[(P, P), (P, P)],
        dimension_numbers=("NCHW", "OIHW", "NCHW"), feature_group_count=C,
        precision=lax.Precision.HIGHEST)
    dw = dw + mod.b_dw.reshape(1, C, 1, 1)
    dw = jnp.where(dw >= 0, dw, 0.01 * dw)
    pw = lax.conv_general_dilated(
        dw, mod.w_pw, window_strides=(1, 1), padding=[(0, 0), (0, 0)],
        dimension_numbers=("NCHW", "OIHW", "NCHW"),
        precision=lax.Precision.HIGHEST)
    ref = pw + mod.b_pw.reshape(1, C_out, 1, 1)
    ref = jnp.where(ref >= 0, ref, 0.01 * ref)

    H_out = (H + 2 * P - K) // S + 1
    assert y.shape == (N, C_out, H_out, H_out), y.shape
    err = float(jnp.max(jnp.abs(y - ref)))
    assert jnp.allclose(y, ref, atol=1e-4, rtol=1e-4), err
    print("KERNEL_OK")
</pallas_src>

<mosaic_0001>
module attributes {stable_mosaic.version = 11 : i64} {
  func.func @_dsconv_kernel(%arg0: i32, %arg1: memref<1x4x18x18xf32, #tpu.memory_space<vmem>>, %arg2: memref<4x3x3xf32, #tpu.memory_space<vmem>>, %arg3: memref<4x1xf32, #tpu.memory_space<vmem>>, %arg4: memref<8x4xf32, #tpu.memory_space<vmem>>, %arg5: memref<8x1xf32, #tpu.memory_space<vmem>>, %arg6: memref<1x8x256xf32, #tpu.memory_space<vmem>>, %arg7: memref<4x256xf32, #tpu.memory_space<vmem>>) attributes {dimension_semantics = [#tpu.dimension_semantics<parallel>], iteration_bounds = array<i64: 2>, scalar_prefetch = 0 : i64, scratch_operands = 1 : i64, tpu.core_type = #tpu.core_type<tc>, window_params = [{transform_indices = @transform_0, window_bounds = array<i64: 1, 4, 18, 18>}, {pipeline_mode = #tpu.pipeline_mode<synchronous>, transform_indices = @transform_1, window_bounds = array<i64: 4, 3, 3>}, {pipeline_mode = #tpu.pipeline_mode<synchronous>, transform_indices = @transform_2, window_bounds = array<i64: 4, 1>}, {pipeline_mode = #tpu.pipeline_mode<synchronous>, transform_indices = @transform_3, window_bounds = array<i64: 8, 4>}, {pipeline_mode = #tpu.pipeline_mode<synchronous>, transform_indices = @transform_4, window_bounds = array<i64: 8, 1>}, {transform_indices = @transform_5, window_bounds = array<i64: 1, 8, 256>}]} {
    %c0 = arith.constant 0 : index
    %c0_0 = arith.constant 0 : index
    %c0_1 = arith.constant 0 : index
    %c0_2 = arith.constant 0 : index
    %0 = vector.load %arg1[%c0, %c0_0, %c0_1, %c0_2] : memref<1x4x18x18xf32, #tpu.memory_space<vmem>>, vector<1x4x18x18xf32>
    %1 = vector.shape_cast %0 : vector<1x4x18x18xf32> to vector<4x18x18xf32>
    %c0_3 = arith.constant 0 : index
    %c0_4 = arith.constant 0 : index
    %c0_5 = arith.constant 0 : index
    %2 = vector.load %arg2[%c0_3, %c0_4, %c0_5] : memref<4x3x3xf32, #tpu.memory_space<vmem>>, vector<4x3x3xf32>
    %3 = vector.extract_strided_slice %1 {offsets = [0, 0, 0], sizes = [4, 16, 16], strides = [1, 1, 1]} : vector<4x18x18xf32> to vector<4x16x16xf32>
    %4 = vector.extract_strided_slice %2 {offsets = [0, 0, 0], sizes = [4, 1, 1], strides = [1, 1, 1]} : vector<4x3x3xf32> to vector<4x1x1xf32>
    %5 = vector.broadcast %4 : vector<4x1x1xf32> to vector<4x16x16xf32>
    %6 = arith.mulf %3, %5 : vector<4x16x16xf32>
    %7 = vector.extract_strided_slice %1 {offsets = [0, 0, 1], sizes = [4, 16, 16], strides = [1, 1, 1]} : vector<4x18x18xf32> to vector<4x16x16xf32>
    %8 = vector.extract_strided_slice %2 {offsets = [0, 0, 1], sizes = [4, 1, 1], strides = [1, 1, 1]} : vector<4x3x3xf32> to vector<4x1x1xf32>
    %9 = vector.broadcast %8 : vector<4x1x1xf32> to vector<4x16x16xf32>
    %10 = arith.mulf %7, %9 : vector<4x16x16xf32>
    %11 = arith.addf %6, %10 : vector<4x16x16xf32>
    %12 = vector.extract_strided_slice %1 {offsets = [0, 0, 2], sizes = [4, 16, 16], strides = [1, 1, 1]} : vector<4x18x18xf32> to vector<4x16x16xf32>
    %13 = vector.extract_strided_slice %2 {offsets = [0, 0, 2], sizes = [4, 1, 1], strides = [1, 1, 1]} : vector<4x3x3xf32> to vector<4x1x1xf32>
    %14 = vector.broadcast %13 : vector<4x1x1xf32> to vector<4x16x16xf32>
    %15 = arith.mulf %12, %14 : vector<4x16x16xf32>
    %16 = arith.addf %11, %15 : vector<4x16x16xf32>
    %17 = vector.extract_strided_slice %1 {offsets = [0, 1, 0], sizes = [4, 16, 16], strides = [1, 1, 1]} : vector<4x18x18xf32> to vector<4x16x16xf32>
    %18 = vector.extract_strided_slice %2 {offsets = [0, 1, 0], sizes = [4, 1, 1], strides = [1, 1, 1]} : vector<4x3x3xf32> to vector<4x1x1xf32>
    %19 = vector.broadcast %18 : vector<4x1x1xf32> to vector<4x16x16xf32>
    %20 = arith.mulf %17, %19 : vector<4x16x16xf32>
    %21 = arith.addf %16, %20 : vector<4x16x16xf32>
    %22 = vector.extract_strided_slice %1 {offsets = [0, 1, 1], sizes = [4, 16, 16], strides = [1, 1, 1]} : vector<4x18x18xf32> to vector<4x16x16xf32>
    %23 = vector.extract_strided_slice %2 {offsets = [0, 1, 1], sizes = [4, 1, 1], strides = [1, 1, 1]} : vector<4x3x3xf32> to vector<4x1x1xf32>
    %24 = vector.broadcast %23 : vector<4x1x1xf32> to vector<4x16x16xf32>
    %25 = arith.mulf %22, %24 : vector<4x16x16xf32>
    %26 = arith.addf %21, %25 : vector<4x16x16xf32>
    %27 = vector.extract_strided_slice %1 {offsets = [0, 1, 2], sizes = [4, 16, 16], strides = [1, 1, 1]} : vector<4x18x18xf32> to vector<4x16x16xf32>
    %28 = vector.extract_strided_slice %2 {offsets = [0, 1, 2], sizes = [4, 1, 1], strides = [1, 1, 1]} : vector<4x3x3xf32> to vector<4x1x1xf32>
    %29 = vector.broadcast %28 : vector<4x1x1xf32> to vector<4x16x16xf32>
    %30 = arith.mulf %27, %29 : vector<4x16x16xf32>
    %31 = arith.addf %26, %30 : vector<4x16x16xf32>
    %32 = vector.extract_strided_slice %1 {offsets = [0, 2, 0], sizes = [4, 16, 16], strides = [1, 1, 1]} : vector<4x18x18xf32> to vector<4x16x16xf32>
    %33 = vector.extract_strided_slice %2 {offsets = [0, 2, 0], sizes = [4, 1, 1], strides = [1, 1, 1]} : vector<4x3x3xf32> to vector<4x1x1xf32>
    %34 = vector.broadcast %33 : vector<4x1x1xf32> to vector<4x16x16xf32>
    %35 = arith.mulf %32, %34 : vector<4x16x16xf32>
    %36 = arith.addf %31, %35 : vector<4x16x16xf32>
    %37 = vector.extract_strided_slice %1 {offsets = [0, 2, 1], sizes = [4, 16, 16], strides = [1, 1, 1]} : vector<4x18x18xf32> to vector<4x16x16xf32>
    %38 = vector.extract_strided_slice %2 {offsets = [0, 2, 1], sizes = [4, 1, 1], strides = [1, 1, 1]} : vector<4x3x3xf32> to vector<4x1x1xf32>
    %39 = vector.broadcast %38 : vector<4x1x1xf32> to vector<4x16x16xf32>
    %40 = arith.mulf %37, %39 : vector<4x16x16xf32>
    %41 = arith.addf %36, %40 : vector<4x16x16xf32>
    %42 = vector.extract_strided_slice %1 {offsets = [0, 2, 2], sizes = [4, 16, 16], strides = [1, 1, 1]} : vector<4x18x18xf32> to vector<4x16x16xf32>
    %43 = vector.extract_strided_slice %2 {offsets = [0, 2, 2], sizes = [4, 1, 1], strides = [1, 1, 1]} : vector<4x3x3xf32> to vector<4x1x1xf32>
    %44 = vector.broadcast %43 : vector<4x1x1xf32> to vector<4x16x16xf32>
    %45 = arith.mulf %42, %44 : vector<4x16x16xf32>
    %46 = arith.addf %41, %45 : vector<4x16x16xf32>
    %47 = vector.extract_strided_slice %46 {offsets = [0, 0, 0], sizes = [4, 1, 16], strides = [1, 1, 1]} : vector<4x16x16xf32> to vector<4x1x16xf32>
    %48 = vector.shape_cast %47 : vector<4x1x16xf32> to vector<4x16xf32>
    %c0_6 = arith.constant 0 : index
    %c0_7 = arith.constant 0 : index
    %49 = vector.load %arg7[%c0_6, %c0_7] : memref<4x256xf32, #tpu.memory_space<vmem>>, vector<4x16xf32>
    tpu.vector_store %arg7[%c0_6, %c0_7], %48 {strides = array<i32>} : memref<4x256xf32, #tpu.memory_space<vmem>>, vector<4x16xf32>,
    %50 = vector.extract_strided_slice %46 {offsets = [0, 1, 0], sizes = [4, 1, 16], strides = [1, 1, 1]} : vector<4x16x16xf32> to vector<4x1x16xf32>
    %51 = vector.shape_cast %50 : vector<4x1x16xf32> to vector<4x16xf32>
    %c0_8 = arith.constant 0 : index
    %c16 = arith.constant 16 : index
    %52 = vector.load %arg7[%c0_8, %c16] : memref<4x256xf32, #tpu.memory_space<vmem>>, vector<4x16xf32>
    tpu.vector_store %arg7[%c0_8, %c16], %51 {strides = array<i32>} : memref<4x256xf32, #tpu.memory_space<vmem>>, vector<4x16xf32>,
    %53 = vector.extract_strided_slice %46 {offsets = [0, 2, 0], sizes = [4, 1, 16], strides = [1, 1, 1]} : vector<4x16x16xf32> to vector<4x1x16xf32>
    %54 = vector.shape_cast %53 : vector<4x1x16xf32> to vector<4x16xf32>
    %c0_9 = arith.constant 0 : index
    %c32 = arith.constant 32 : index
    %55 = vector.load %arg7[%c0_9, %c32] : memref<4x256xf32, #tpu.memory_space<vmem>>, vector<4x16xf32>
    tpu.vector_store %arg7[%c0_9, %c32], %54 {strides = array<i32>} : memref<4x256xf32, #tpu.memory_space<vmem>>, vector<4x16xf32>,
    %56 = vector.extract_strided_slice %46 {offsets = [0, 3, 0], sizes = [4, 1, 16], strides = [1, 1, 1]} : vector<4x16x16xf32> to vector<4x1x16xf32>
    %57 = vector.shape_cast %56 : vector<4x1x16xf32> to vector<4x16xf32>
    %c0_10 = arith.constant 0 : index
    %c48 = arith.constant 48 : index
    %58 = vector.load %arg7[%c0_10, %c48] : memref<4x256xf32, #tpu.memory_space<vmem>>, vector<4x16xf32>
    tpu.vector_store %arg7[%c0_10, %c48], %57 {strides = array<i32>} : memref<4x256xf32, #tpu.memory_space<vmem>>, vector<4x16xf32>,
    %59 = vector.extract_strided_slice %46 {offsets = [0, 4, 0], sizes = [4, 1, 16], strides = [1, 1, 1]} : vector<4x16x16xf32> to vector<4x1x16xf32>
    %60 = vector.shape_cast %59 : vector<4x1x16xf32> to vector<4x16xf32>
    %c0_11 = arith.constant 0 : index
    %c64 = arith.constant 64 : index
    %61 = vector.load %arg7[%c0_11, %c64] : memref<4x256xf32, #tpu.memory_space<vmem>>, vector<4x16xf32>
    tpu.vector_store %arg7[%c0_11, %c64], %60 {strides = array<i32>} : memref<4x256xf32, #tpu.memory_space<vmem>>, vector<4x16xf32>,
    %62 = vector.extract_strided_slice %46 {offsets = [0, 5, 0], sizes = [4, 1, 16], strides = [1, 1, 1]} : vector<4x16x16xf32> to vector<4x1x16xf32>
    %63 = vector.shape_cast %62 : vector<4x1x16xf32> to vector<4x16xf32>
    %c0_12 = arith.constant 0 : index
    %c80 = arith.constant 80 : index
    %64 = vector.load %arg7[%c0_12, %c80] : memref<4x256xf32, #tpu.memory_space<vmem>>, vector<4x16xf32>
    tpu.vector_store %arg7[%c0_12, %c80], %63 {strides = array<i32>} : memref<4x256xf32, #tpu.memory_space<vmem>>, vector<4x16xf32>,
    %65 = vector.extract_strided_slice %46 {offsets = [0, 6, 0], sizes = [4, 1, 16], strides = [1, 1, 1]} : vector<4x16x16xf32> to vector<4x1x16xf32>
    %66 = vector.shape_cast %65 : vector<4x1x16xf32> to vector<4x16xf32>
    %c0_13 = arith.constant 0 : index
    %c96 = arith.constant 96 : index
    %67 = vector.load %arg7[%c0_13, %c96] : memref<4x256xf32, #tpu.memory_space<vmem>>, vector<4x16xf32>
    tpu.vector_store %arg7[%c0_13, %c96], %66 {strides = array<i32>} : memref<4x256xf32, #tpu.memory_space<vmem>>, vector<4x16xf32>,
    %68 = vector.extract_strided_slice %46 {offsets = [0, 7, 0], sizes = [4, 1, 16], strides = [1, 1, 1]} : vector<4x16x16xf32> to vector<4x1x16xf32>
    %69 = vector.shape_cast %68 : vector<4x1x16xf32> to vector<4x16xf32>
    %c0_14 = arith.constant 0 : index
    %c112 = arith.constant 112 : index
    %70 = vector.load %arg7[%c0_14, %c112] : memref<4x256xf32, #tpu.memory_space<vmem>>, vector<4x16xf32>
    tpu.vector_store %arg7[%c0_14, %c112], %69 {strides = array<i32>} : memref<4x256xf32, #tpu.memory_space<vmem>>, vector<4x16xf32>,
    %71 = vector.extract_strided_slice %46 {offsets = [0, 8, 0], sizes = [4, 1, 16], strides = [1, 1, 1]} : vector<4x16x16xf32> to vector<4x1x16xf32>
    %72 = vector.shape_cast %71 : vector<4x1x16xf32> to vector<4x16xf32>
    %c0_15 = arith.constant 0 : index
    %c128 = arith.constant 128 : index
    %73 = vector.load %arg7[%c0_15, %c128] : memref<4x256xf32, #tpu.memory_space<vmem>>, vector<4x16xf32>
    tpu.vector_store %arg7[%c0_15, %c128], %72 {strides = array<i32>} : memref<4x256xf32, #tpu.memory_space<vmem>>, vector<4x16xf32>,
    %74 = vector.extract_strided_slice %46 {offsets = [0, 9, 0], sizes = [4, 1, 16], strides = [1, 1, 1]} : vector<4x16x16xf32> to vector<4x1x16xf32>
    %75 = vector.shape_cast %74 : vector<4x1x16xf32> to vector<4x16xf32>
    %c0_16 = arith.constant 0 : index
    %c144 = arith.constant 144 : index
    %76 = vector.load %arg7[%c0_16, %c144] : memref<4x256xf32, #tpu.memory_space<vmem>>, vector<4x16xf32>
    tpu.vector_store %arg7[%c0_16, %c144], %75 {strides = array<i32>} : memref<4x256xf32, #tpu.memory_space<vmem>>, vector<4x16xf32>,
    %77 = vector.extract_strided_slice %46 {offsets = [0, 10, 0], sizes = [4, 1, 16], strides = [1, 1, 1]} : vector<4x16x16xf32> to vector<4x1x16xf32>
    %78 = vector.shape_cast %77 : vector<4x1x16xf32> to vector<4x16xf32>
    %c0_17 = arith.constant 0 : index
    %c160 = arith.constant 160 : index
    %79 = vector.load %arg7[%c0_17, %c160] : memref<4x256xf32, #tpu.memory_space<vmem>>, vector<4x16xf32>
    tpu.vector_store %arg7[%c0_17, %c160], %78 {strides = array<i32>} : memref<4x256xf32, #tpu.memory_space<vmem>>, vector<4x16xf32>,
    %80 = vector.extract_strided_slice %46 {offsets = [0, 11, 0], sizes = [4, 1, 16], strides = [1, 1, 1]} : vector<4x16x16xf32> to vector<4x1x16xf32>
    %81 = vector.shape_cast %80 : vector<4x1x16xf32> to vector<4x16xf32>
    %c0_18 = arith.constant 0 : index
    %c176 = arith.constant 176 : index
    %82 = vector.load %arg7[%c0_18, %c176] : memref<4x256xf32, #tpu.memory_space<vmem>>, vector<4x16xf32>
    tpu.vector_store %arg7[%c0_18, %c176], %81 {strides = array<i32>} : memref<4x256xf32, #tpu.memory_space<vmem>>, vector<4x16xf32>,
    %83 = vector.extract_strided_slice %46 {offsets = [0, 12, 0], sizes = [4, 1, 16], strides = [1, 1, 1]} : vector<4x16x16xf32> to vector<4x1x16xf32>
    %84 = vector.shape_cast %83 : vector<4x1x16xf32> to vector<4x16xf32>
    %c0_19 = arith.constant 0 : index
    %c192 = arith.constant 192 : index
    %85 = vector.load %arg7[%c0_19, %c192] : memref<4x256xf32, #tpu.memory_space<vmem>>, vector<4x16xf32>
    tpu.vector_store %arg7[%c0_19, %c192], %84 {strides = array<i32>} : memref<4x256xf32, #tpu.memory_space<vmem>>, vector<4x16xf32>,
    %86 = vector.extract_strided_slice %46 {offsets = [0, 13, 0], sizes = [4, 1, 16], strides = [1, 1, 1]} : vector<4x16x16xf32> to vector<4x1x16xf32>
    %87 = vector.shape_cast %86 : vector<4x1x16xf32> to vector<4x16xf32>
    %c0_20 = arith.constant 0 : index
    %c208 = arith.constant 208 : index
    %88 = vector.load %arg7[%c0_20, %c208] : memref<4x256xf32, #tpu.memory_space<vmem>>, vector<4x16xf32>
    tpu.vector_store %arg7[%c0_20, %c208], %87 {strides = array<i32>} : memref<4x256xf32, #tpu.memory_space<vmem>>, vector<4x16xf32>,
    %89 = vector.extract_strided_slice %46 {offsets = [0, 14, 0], sizes = [4, 1, 16], strides = [1, 1, 1]} : vector<4x16x16xf32> to vector<4x1x16xf32>
    %90 = vector.shape_cast %89 : vector<4x1x16xf32> to vector<4x16xf32>
    %c0_21 = arith.constant 0 : index
    %c224 = arith.constant 224 : index
    %91 = vector.load %arg7[%c0_21, %c224] : memref<4x256xf32, #tpu.memory_space<vmem>>, vector<4x16xf32>
    tpu.vector_store %arg7[%c0_21, %c224], %90 {strides = array<i32>} : memref<4x256xf32, #tpu.memory_space<vmem>>, vector<4x16xf32>,
    %92 = vector.extract_strided_slice %46 {offsets = [0, 15, 0], sizes = [4, 1, 16], strides = [1, 1, 1]} : vector<4x16x16xf32> to vector<4x1x16xf32>
    %93 = vector.shape_cast %92 : vector<4x1x16xf32> to vector<4x16xf32>
    %c0_22 = arith.constant 0 : index
    %c240 = arith.constant 240 : index
    %94 = vector.load %arg7[%c0_22, %c240] : memref<4x256xf32, #tpu.memory_space<vmem>>, vector<4x16xf32>
    tpu.vector_store %arg7[%c0_22, %c240], %93 {strides = array<i32>} : memref<4x256xf32, #tpu.memory_space<vmem>>, vector<4x16xf32>,
    %c0_23 = arith.constant 0 : index
    %c0_24 = arith.constant 0 : index
    %95 = vector.load %arg7[%c0_23, %c0_24] : memref<4x256xf32, #tpu.memory_space<vmem>>, vector<4x256xf32>
    %c0_25 = arith.constant 0 : index
    %c0_26 = arith.constant 0 : index
    %96 = vector.load %arg3[%c0_25, %c0_26] : memref<4x1xf32, #tpu.memory_space<vmem>>, vector<4x1xf32>
    %97 = vector.broadcast %96 : vector<4x1xf32> to vector<4x256xf32>
    %98 = arith.addf %95, %97 : vector<4x256xf32>
    %cst = arith.constant 0.000000e+00 : f32
    %99 = vector.broadcast %cst : f32 to vector<4x256xf32>
    %100 = arith.cmpf oge, %98, %99 : vector<4x256xf32>
    %cst_27 = arith.constant 0.00999999977 : f32
    %101 = vector.broadcast %cst_27 : f32 to vector<4x256xf32>
    %102 = arith.mulf %101, %98 : vector<4x256xf32>
    %103 = arith.select %100, %98, %102 : vector<4x256xi1>, vector<4x256xf32>
    %c0_28 = arith.constant 0 : index
    %c0_29 = arith.constant 0 : index
    %104 = vector.load %arg4[%c0_28, %c0_29] : memref<8x4xf32, #tpu.memory_space<vmem>>, vector<8x4xf32>
    %cst_30 = arith.constant dense<0.000000e+00> : vector<8x256xf32>
    %105 = tpu.matmul %104, %103, %cst_30 {dimension_numbers = #tpu.dot_dimension_numbers<[1], [0], [0], [1], [0, 0, 1, 1], [], []>, precision = #tpu.contract_precision<fp32>} : vector<8x4xf32>, vector<4x256xf32>, vector<8x256xf32> -> vector<8x256xf32>
    %c0_31 = arith.constant 0 : index
    %c0_32 = arith.constant 0 : index
    %106 = vector.load %arg5[%c0_31, %c0_32] : memref<8x1xf32, #tpu.memory_space<vmem>>, vector<8x1xf32>
    %107 = vector.broadcast %106 : vector<8x1xf32> to vector<8x256xf32>
    %108 = arith.addf %105, %107 : vector<8x256xf32>
    %cst_33 = arith.constant 0.000000e+00 : f32
    %109 = vector.broadcast %cst_33 : f32 to vector<8x256xf32>
    %110 = arith.cmpf oge, %108, %109 : vector<8x256xf32>
    %cst_34 = arith.constant 0.00999999977 : f32
    %111 = vector.broadcast %cst_34 : f32 to vector<8x256xf32>
    %112 = arith.mulf %111, %108 : vector<8x256xf32>
    %113 = arith.select %110, %108, %112 : vector<8x256xi1>, vector<8x256xf32>
    %c0_35 = arith.constant 0 : index
    %c0_36 = arith.constant 0 : index
    %c0_37 = arith.constant 0 : index
    %114 = vector.load %arg6[%c0_35, %c0_36, %c0_37] : memref<1x8x256xf32, #tpu.memory_space<vmem>>, vector<1x8x256xf32>
    %115 = vector.shape_cast %114 : vector<1x8x256xf32> to vector<8x256xf32>
    %116 = vector.shape_cast %113 : vector<8x256xf32> to vector<1x8x256xf32>
    tpu.vector_store %arg6[%c0_35, %c0_36, %c0_37], %116 {strides = array<i32>} : memref<1x8x256xf32, #tpu.memory_space<vmem>>, vector<1x8x256xf32>,
    return
  }
  func.func @transform_0(%arg0: i32) -> (i32, i32, i32, i32) {
    %c0_i32 = arith.constant 0 : i32
    %c0_i32_0 = arith.constant 0 : i32
    %c0_i32_1 = arith.constant 0 : i32
    %c0_i32_2 = arith.constant 0 : i32
    return %arg0, %c0_i32, %c0_i32_0, %c0_i32_1 : i32, i32, i32, i32
  }
  func.func @transform_1(%arg0: i32) -> (i32, i32, i32) {
    %c0_i32 = arith.constant 0 : i32
    %c0_i32_0 = arith.constant 0 : i32
    %c0_i32_1 = arith.constant 0 : i32
    %c0_i32_2 = arith.constant 0 : i32
    return %c0_i32, %c0_i32_0, %c0_i32_1 : i32, i32, i32
  }
  func.func @transform_2(%arg0: i32) -> (i32, i32) {
    %c0_i32 = arith.constant 0 : i32
    %c0_i32_0 = arith.constant 0 : i32
    %c0_i32_1 = arith.constant 0 : i32
    return %c0_i32, %c0_i32_0 : i32, i32
  }
  func.func @transform_3(%arg0: i32) -> (i32, i32) {
    %c0_i32 = arith.constant 0 : i32
    %c0_i32_0 = arith.constant 0 : i32
    %c0_i32_1 = arith.constant 0 : i32
    return %c0_i32, %c0_i32_0 : i32, i32
  }
  func.func @transform_4(%arg0: i32) -> (i32, i32) {
    %c0_i32 = arith.constant 0 : i32
    %c0_i32_0 = arith.constant 0 : i32
    %c0_i32_1 = arith.constant 0 : i32
    return %c0_i32, %c0_i32_0 : i32, i32
  }
  func.func @transform_5(%arg0: i32) -> (i32, i32, i32) {
    %c0_i32 = arith.constant 0 : i32
    %c0_i32_0 = arith.constant 0 : i32
    %c0_i32_1 = arith.constant 0 : i32
    return %arg0, %c0_i32, %c0_i32_0 : i32, i32, i32
  }
}

</mosaic_0001>

<llo_original>
// kernel: _lambda_.1
$region0: #{_lambda_.1}
  #allocation0 [shape = 'u32[]', space=smem, size = 0x4, offset = 0x4, fixed_abs, tag = 'smem constant byte address 0x4 - core index']
  #allocation1 [shape = 'u32[144,128]{1,0:T(1,128)}', space=vmem, size = 0x12000, scoped, tag = 'internal scratch']
  #allocation2 [shape = 'f32[4,256]{1,0:T(4,128)}', space=vmem, size = 0x1000, scoped, tag = 'scratch operand']
  %s0 = inlined_call_operand.vmem [shape: f32[2,4,18,18], index: 0, kind: input, shape index: {}]
  %s1 = inlined_call_operand.vmem [shape: f32[4,3,3], index: 1, kind: input, shape index: {}]
  %s2 = inlined_call_operand.vmem [shape: f32[4,1], index: 2, kind: input, shape index: {}]
  %s3 = inlined_call_operand.vmem [shape: f32[8,4], index: 3, kind: input, shape index: {}]
  %s4 = inlined_call_operand.vmem [shape: f32[8,1], index: 4, kind: input, shape index: {}]
  %s5 = inlined_call_operand.vmem [shape: f32[2,8,256], index: 5, kind: output, shape index: {}]
  %s6 = sld [smem:[#allocation0]]
  $region53: #{_lambda_.1} parent=0
    _
  %s8 = ssub.s32 1, %s6
  %s9 = scalar_select 0, %s8, %s6
  loop: start=0, step=1, limit=4
  $region2: #{_lambda_.1} parent=0 // loop_pre_header
    _
  $region3: #{_lambda_.1} parent=0 // loop_header
    %s11 = sphi 0, %s15
    %p12 = scmp.ge.s32.totalorder %s11, 4
    %s21 = sphi 0, %s23
    %s24 = sphi 0, %s21
    %s25 = sphi 0, %s24
    %s41 = sphi 0, %s25
    %s45 = sphi 0, %s45
    %s47 = sphi 0, %s45
    %s48 = sphi 0, %s47
    %s62 = sphi 0, %s48
    %s66 = sphi 0, %s66
    %s68 = sphi 0, %s66
    %s69 = sphi 0, %s68
    %s83 = sphi 0, %s69
    %s87 = sphi 0, %s87
    %s89 = sphi 0, %s87
    %s90 = sphi 0, %s89
    %s104 = sphi 0, %s90
    %s108 = sphi 0, %s108
    %s110 = sphi 0, %s108
    %s111 = sphi 0, %s110
    %s125 = sphi 0, %s111
    %s131 = sphi 0, %s133
    %s134 = sphi 0, %s131
    %s135 = sphi 0, %s134
    %s151 = sphi 0, %s135
  $region4: #{_lambda_.1} parent=0 // loop_header_branch
    %14 = sbr.rel (%p12) target = $region8
  $region5: #{_lambda_.1} parent=0 // loop_body
    %s16 = ssub.s32 %s11, 1
    %s17 = ssub.s32 %s11, 2
    %s18 = sadd.s32 %s11, 1
    %s19 = ssub.s32 %s11, %s18
    %p20 = scmp.eq.s32.totalorder %s19, 0
    %s22 = sadd.s32 %s21, 1
    %s23 = scalar_select %p20, %s21, %s22
    %p26 = pneg %p20
    %p27 = scmp.eq.s32.totalorder %s11, 1
    %p28 = por %p26, %p27
    %p29 = scmp.ne.s32.totalorder %s21, %s24
    %p30 = scmp.eq.s32.totalorder %s11, 0
    %p31 = por %p29, %p30
    %p32 = scmp.ne.s32.totalorder %s21, %s24
    %p33 = scmp.eq.s32.totalorder %s16, 1
    %p34 = por %p32, %p33
    %p35 = scmp.ne.s32.totalorder %s24, %s25
    %p36 = scmp.eq.s32.totalorder %s16, 0
    %p37 = por %p35, %p36
    %p38 = scmp.ne.s32.totalorder %s24, %s25
    %p39 = scmp.eq.s32.totalorder %s17, 1
    %p40 = por %p38, %p39
    %p42 = scmp.ne.s32.totalorder %s25, %s41
    %p43 = scmp.eq.s32.totalorder %s17, 0
    %p44 = por %p42, %p43
    %s46 = sadd.s32 %s45, 1
    %p49 = scmp.eq.s32.totalorder %s11, 1
    %p50 = scmp.ne.s32.totalorder %s45, %s47
    %p51 = scmp.eq.s32.totalorder %s11, 0
    %p52 = por %p50, %p51
    %p53 = scmp.ne.s32.totalorder %s45, %s47
    %p54 = scmp.eq.s32.totalorder %s16, 1
    %p55 = por %p53, %p54
    %p56 = scmp.ne.s32.totalorder %s47, %s48
    %p57 = scmp.eq.s32.totalorder %s16, 0
    %p58 = por %p56, %p57
    %p59 = scmp.ne.s32.totalorder %s47, %s48
    %p60 = scmp.eq.s32.totalorder %s17, 1
    %p61 = por %p59, %p60
    %p63 = scmp.ne.s32.totalorder %s48, %s62
    %p64 = scmp.eq.s32.totalorder %s17, 0
    %p65 = por %p63, %p64
    %s67 = sadd.s32 %s66, 1
    %p70 = scmp.eq.s32.totalorder %s11, 1
    %p71 = scmp.ne.s32.totalorder %s66, %s68
    %p72 = scmp.eq.s32.totalorder %s11, 0
    %p73 = por %p71, %p72
    %p74 = scmp.ne.s32.totalorder %s66, %s68
    %p75 = scmp.eq.s32.totalorder %s16, 1
    %p76 = por %p74, %p75
    %p77 = scmp.ne.s32.totalorder %s68, %s69
    %p78 = scmp.eq.s32.totalorder %s16, 0
    %p79 = por %p77, %p78
    %p80 = scmp.ne.s32.totalorder %s68, %s69
    %p81 = scmp.eq.s32.totalorder %s17, 1
    %p82 = por %p80, %p81
    %p84 = scmp.ne.s32.totalorder %s69, %s83
    %p85 = scmp.eq.s32.totalorder %s17, 0
    %p86 = por %p84, %p85
    %s88 = sadd.s32 %s87, 1
    %p91 = scmp.eq.s32.totalorder %s11, 1
    %p92 = scmp.ne.s32.totalorder %s87, %s89
    %p93 = scmp.eq.s32.totalorder %s11, 0
    %p94 = por %p92, %p93
    %p95 = scmp.ne.s32.totalorder %s87, %s89
    %p96 = scmp.eq.s32.totalorder %s16, 1
    %p97 = por %p95, %p96
    %p98 = scmp.ne.s32.totalorder %s89, %s90
    %p99 = scmp.eq.s32.totalorder %s16, 0
    %p100 = por %p98, %p99
    %p101 = scmp.ne.s32.totalorder %s89, %s90
    %p102 = scmp.eq.s32.totalorder %s17, 1
    %p103 = por %p101, %p102
    %p105 = scmp.ne.s32.totalorder %s90, %s104
    %p106 = scmp.eq.s32.totalorder %s17, 0
    %p107 = por %p105, %p106
    %s109 = sadd.s32 %s108, 1
    %p112 = scmp.eq.s32.totalorder %s11, 1
    %p113 = scmp.ne.s32.totalorder %s108, %s110
    %p114 = scmp.eq.s32.totalorder %s11, 0
    %p115 = por %p113, %p114
    %p116 = scmp.ne.s32.totalorder %s108, %s110
    %p117 = scmp.eq.s32.totalorder %s16, 1
    %p118 = por %p116, %p117
    %p119 = scmp.ne.s32.totalorder %s110, %s111
    %p120 = scmp.eq.s32.totalorder %s16, 0
    %p121 = por %p119, %p120
    %p122 = scmp.ne.s32.totalorder %s110, %s111
    %p123 = scmp.eq.s32.totalorder %s17, 1
    %p124 = por %p122, %p123
    %p126 = scmp.ne.s32.totalorder %s111, %s125
    %p127 = scmp.eq.s32.totalorder %s17, 0
    %p128 = por %p126, %p127
    %s129 = ssub.s32 %s11, %s18
    %p130 = scmp.eq.s32.totalorder %s129, 0
    %s132 = sadd.s32 %s131, 1
    %s133 = scalar_select %p130, %s131, %s132
    %p136 = pneg %p130
    %p137 = scmp.eq.s32.totalorder %s11, 1
    %p138 = por %p136, %p137
    %p139 = scmp.ne.s32.totalorder %s131, %s134
    %p140 = scmp.eq.s32.totalorder %s11, 0
    %p141 = por %p139, %p140
    %p142 = scmp.ne.s32.totalorder %s131, %s134
    %p143 = scmp.eq.s32.totalorder %s16, 1
    %p144 = por %p142, %p143
    %p145 = scmp.ne.s32.totalorder %s134, %s135
    %p146 = scmp.eq.s32.totalorder %s16, 0
    %p147 = por %p145, %p146
    %p148 = scmp.ne.s32.totalorder %s134, %s135
    %p149 = scmp.eq.s32.totalorder %s17, 1
    %p150 = por %p148, %p149
    %p152 = scmp.ne.s32.totalorder %s135, %s151
    %p153 = scmp.eq.s32.totalorder %s17, 0
    %p154 = por %p152, %p153
    %p155 = scmp.le.s32.totalorder 1, %s11
    %p156 = scmp.lt.s32.totalorder %s11, 3
    %p157 = pnand %p155, %p156
    %p158 = pneg %p157
    // Predicated region
    $region9: #{_lambda_.1} parent=5 // pred_check
      _
    $region10: #{_lambda_.1} parent=5 // pred_check_branch
      %160 = sbr.rel (%p157) target = $region12
    $region11: #{_lambda_.1} parent=5 // pred_region
      %s161 = ssub.s32 %s11, 1
      // Predicated region
      $region13: #{_lambda_.1} parent=11 // pred_check
        %p162 = pneg %p58
      $region14: #{_lambda_.1} parent=11 // pred_check_branch
        %164 = sbr.rel (%p162) target = $region16
      $region15: #{_lambda_.1} parent=11 // pred_region
        _
      $region16: #{_lambda_.1} parent=11 // pred_fallthru
        _
      // Predicated region
      $region17: #{_lambda_.1} parent=11 // pred_check
        %p165 = pneg %p79
      $region18: #{_lambda_.1} parent=11 // pred_check_branch
        %167 = sbr.rel (%p165) target = $region20
      $region19: #{_lambda_.1} parent=11 // pred_region
        _
      $region20: #{_lambda_.1} parent=11 // pred_fallthru
        _
      // Predicated region
      $region21: #{_lambda_.1} parent=11 // pred_check
        %p168 = pneg %p100
      $region22: #{_lambda_.1} parent=11 // pred_check_branch
        %170 = sbr.rel (%p168) target = $region24
      $region23: #{_lambda_.1} parent=11 // pred_region
        _
      $region24: #{_lambda_.1} parent=11 // pred_fallthru
        _
      // Predicated region
      $region25: #{_lambda_.1} parent=11 // pred_check
        %p171 = pneg %p121
      $region26: #{_lambda_.1} parent=11 // pred_check_branch
        %173 = sbr.rel (%p171) target = $region28
      $region27: #{_lambda_.1} parent=11 // pred_region
        _
      $region28: #{_lambda_.1} parent=11 // pred_fallthru
        _
    $region12: #{_lambda_.1} parent=5 // pred_fallthru
      _
    %p174 = scmp.lt.s32.totalorder %s11, 2
    // Predicated region
    $region29: #{_lambda_.1} parent=5 // pred_check
      %p175 = pneg %p174
    $region30: #{_lambda_.1} parent=5 // pred_check_branch
      %177 = sbr.rel (%p175) target = $region32
    $region31: #{_lambda_.1} parent=5 // pred_region
      // Predicated region
      $region33: #{_lambda_.1} parent=31 // pred_check
        %p178 = pneg %p31
      $region34: #{_lambda_.1} parent=31 // pred_check_branch
        %180 = sbr.rel (%p178) target = $region36
      $region35: #{_lambda_.1} parent=31 // pred_region
        %p181 = scmp.lt.s32.totalorder %s11, 1
        %s182 = scalar_select %p181, %s11, 1
        %s183 = smul.addr %s182, 12
        %s184 = smul.addr %s183, 8
        %s185 = scalar_lea.vmem %s0, %s184
      $region36: #{_lambda_.1} parent=31 // pred_fallthru
        _
    $region32: #{_lambda_.1} parent=5 // pred_fallthru
      _
    %p186 = scmp.le.s32.totalorder 1, %s11
    %p187 = scmp.lt.s32.totalorder %s11, 3
    %p188 = pnand %p186, %p187
    %p189 = pneg %p188
    // Predicated region
    $region37: #{_lambda_.1} parent=5 // pred_check
      _
    $region38: #{_lambda_.1} parent=5 // pred_check_branch
      %191 = sbr.rel (%p188) target = $region40
    $region39: #{_lambda_.1} parent=5 // pred_region
      %s192 = ssub.s32 %s11, 1
      %p193 = scmp.lt.s32.totalorder %s16, 1
      %s194 = scalar_select %p193, %s16, 1
      %s195 = smul.addr %s194, 12
      %s196 = smul.addr %s195, 8
      %s197 = scalar_lea.vmem %s0, %s196
      %p198 = pneg %p37
      %p199 = pneg %p34
      %p200 = pneg %p58
      %p201 = pneg %p55
      %p202 = pneg %p79
      %p203 = pneg %p76
      %p204 = pneg %p100
      %p205 = pneg %p97
      %p206 = pneg %p121
      %p207 = pneg %p118
      %p208 = pneg %p147
      %p209 = pneg %p144
      %p210 = scmp.lt.s32.totalorder %s16, 1
      %s211 = scalar_select %p210, %s16, 1
      %s212 = smul.addr %s211, 2
      %s213 = smul.addr %s212, 8
      %s214 = scalar_lea.vmem %s5, %s213
      %p215 = scmp.lt.s32.totalorder %s16, 1
      %s216 = scalar_select %p215, %s16, 1
      %s217 = smul.addr %s216, 12
      %s218 = smul.addr %s217, 8
      %s219 = scalar_lea.vmem %s0, %s218
      %p220 = scmp.lt.s32.totalorder %s16, 1
      %s221 = scalar_select %p220, %s16, 1
      %s222 = smul.addr %s221, 2
      %s223 = smul.addr %s222, 8
      %s224 = scalar_lea.vmem %s5, %s223
      %v225 = vld [vmem:[%s219] sm:$0xff]
      %v226 = vld [vmem:[%s219 + $0x8] sm:$0xff]
      %v227 = vld [vmem:[%s219 + $0x10] sm:$0x3]
      %v228 = vld [vmem:[%s219 + $0x18] sm:$0xff]
      %v229 = vld [vmem:[%s219 + $0x20] sm:$0xff]
      %v230 = vld [vmem:[%s219 + $0x28] sm:$0x3]
      %v231 = vld [vmem:[%s219 + $0x30] sm:$0xff]
      %v232 = vld [vmem:[%s219 + $0x38] sm:$0xff]
      %v233 = vld [vmem:[%s219 + $0x40] sm:$0x3]
      %v234 = vld [vmem:[%s219 + $0x48] sm:$0xff]
      %v235 = vld [vmem:[%s219 + $0x50] sm:$0xff]
      %v236 = vld [vmem:[%s219 + $0x58] sm:$0x3]
      %v237 = vld [vmem:[%s1] sm:$0x7]
      %v238 = vld [vmem:[%s1 + $0x4] sm:$0x7]
      %v239 = vld [vmem:[%s1 + $0x8] sm:$0x7]
      %v240 = vld [vmem:[%s1 + $0xc] sm:$0x7]
      %s242 = vtos %v237
      %v243 = vstv %s242
      %s246 = vtos %v238
      %v247 = vstv %s246
      %s250 = vtos %v239
      %v251 = vstv %s250
      %s254 = vtos %v240
      %v255 = vstv %s254
      %v257 = vmul.f32 %v225, %v243
      %v258 = vmul.f32 %v226, %v243
      %v259 = vmul.f32 %v228, %v247
      %v260 = vmul.f32 %v229, %v247
      %v261 = vmul.f32 %v231, %v251
      %v262 = vmul.f32 %v232, %v251
      %v263 = vmul.f32 %v234, %v255
      %v264 = vmul.f32 %v235, %v255
      %265 = vrot.lane.b32.xlu0 %v237, 127
      %v266 = vpop.permute.xlu0 %265
      %267 = vrot.lane.b32.xlu0 %v238, 127
      %v268 = vpop.permute.xlu0 %267
      %269 = vrot.lane.b32.xlu0 %v239, 127
      %v270 = vpop.permute.xlu0 %269
      %271 = vrot.lane.b32.xlu0 %v240, 127
      %v272 = vpop.permute.xlu0 %271
      %s273 = vtos %v266
      %v274 = vstv %s273
      %s276 = vtos %v268
      %v277 = vstv %s276
      %s279 = vtos %v270
      %v280 = vstv %s279
      %s282 = vtos %v272
      %v283 = vstv %s282
      %v285 = vmul.f32 %v225, %v274
      %v286 = vmul.f32 %v226, %v274
      %v287 = vmul.f32 %v228, %v277
      %v288 = vmul.f32 %v229, %v277
      %v289 = vmul.f32 %v231, %v280
      %v290 = vmul.f32 %v232, %v280
      %v291 = vmul.f32 %v234, %v283
      %v292 = vmul.f32 %v235, %v283
      %301 = vrot.lane.b32.xlu0 %v285, 127
      %v302 = vpop.permute.xlu0 %301
      %303 = vrot.lane.b32.xlu0 %v286, 127
      %v304 = vpop.permute.xlu0 %303
      %305 = vrot.lane.b32.xlu0 %v287, 127
      %v306 = vpop.permute.xlu0 %305
      %307 = vrot.lane.b32.xlu0 %v288, 127
      %v308 = vpop.permute.xlu0 %307
      %309 = vrot.lane.b32.xlu0 %v289, 127
      %v310 = vpop.permute.xlu0 %309
      %311 = vrot.lane.b32.xlu0 %v290, 127
      %v312 = vpop.permute.xlu0 %311
      %313 = vrot.lane.b32.xlu0 %v291, 127
      %v314 = vpop.permute.xlu0 %313
      %315 = vrot.lane.b32.xlu0 %v292, 127
      %v316 = vpop.permute.xlu0 %315
      %v325 = vadd.f32 %v257, %v302
      %v326 = vadd.f32 %v258, %v304
      %v327 = vadd.f32 %v259, %v306
      %v328 = vadd.f32 %v260, %v308
      %v329 = vadd.f32 %v261, %v310
      %v330 = vadd.f32 %v262, %v312
      %v331 = vadd.f32 %v263, %v314
      %v332 = vadd.f32 %v264, %v316
      %333 = vrot.lane.b32.xlu0 %v237, 126
      %v334 = vpop.permute.xlu0 %333
      %335 = vrot.lane.b32.xlu0 %v238, 126
      %v336 = vpop.permute.xlu0 %335
      %337 = vrot.lane.b32.xlu0 %v239, 126
      %v338 = vpop.permute.xlu0 %337
      %339 = vrot.lane.b32.xlu0 %v240, 126
      %v340 = vpop.permute.xlu0 %339
      %s341 = vtos %v334
      %v342 = vstv %s341
      %s344 = vtos %v336
      %v345 = vstv %s344
      %s347 = vtos %v338
      %v348 = vstv %s347
      %s350 = vtos %v340
      %v351 = vstv %s350
      %v353 = vmul.f32 %v225, %v342
      %v354 = vmul.f32 %v226, %v342
      %v355 = vmul.f32 %v228, %v345
      %v356 = vmul.f32 %v229, %v345
      %v357 = vmul.f32 %v231, %v348
      %v358 = vmul.f32 %v232, %v348
      %v359 = vmul.f32 %v234, %v351
      %v360 = vmul.f32 %v235, %v351
      %369 = vrot.lane.b32.xlu0 %v353, 126
      %v370 = vpop.permute.xlu0 %369
      %371 = vrot.lane.b32.xlu0 %v354, 126
      %v372 = vpop.permute.xlu0 %371
      %373 = vrot.lane.b32.xlu0 %v355, 126
      %v374 = vpop.permute.xlu0 %373
      %375 = vrot.lane.b32.xlu0 %v356, 126
      %v376 = vpop.permute.xlu0 %375
      %377 = vrot.lane.b32.xlu0 %v357, 126
      %v378 = vpop.permute.xlu0 %377
      %379 = vrot.lane.b32.xlu0 %v358, 126
      %v380 = vpop.permute.xlu0 %379
      %381 = vrot.lane.b32.xlu0 %v359, 126
      %v382 = vpop.permute.xlu0 %381
      %383 = vrot.lane.b32.xlu0 %v360, 126
      %v384 = vpop.permute.xlu0 %383
      %v393 = vadd.f32 %v325, %v370
      %v394 = vadd.f32 %v326, %v372
      %v395 = vadd.f32 %v327, %v374
      %v396 = vadd.f32 %v328, %v376
      %v397 = vadd.f32 %v329, %v378
      %v398 = vadd.f32 %v330, %v380
      %v399 = vadd.f32 %v331, %v382
      %v400 = vadd.f32 %v332, %v384
      %v401 = vrot.slane %v237, 1
      %v402 = vrot.slane %v238, 1
      %v403 = vrot.slane %v239, 1
      %v404 = vrot.slane %v240, 1
      %s405 = vtos %v401
      %v406 = vstv %s405
      %s408 = vtos %v402
      %v409 = vstv %s408
      %s411 = vtos %v403
      %v412 = vstv %s411
      %s414 = vtos %v404
      %v415 = vstv %s414
      %v417 = vmul.f32 %v225, %v406
      %v418 = vmul.f32 %v226, %v406
      %v419 = vmul.f32 %v227, %v406
      %v420 = vmul.f32 %v228, %v409
      %v421 = vmul.f32 %v229, %v409
      %v422 = vmul.f32 %v230, %v409
      %v423 = vmul.f32 %v231, %v412
      %v424 = vmul.f32 %v232, %v412
      %v425 = vmul.f32 %v233, %v412
      %v426 = vmul.f32 %v234, %v415
      %v427 = vmul.f32 %v235, %v415
      %v428 = vmul.f32 %v236, %v415
      %vm441 = vcmask 1046528
      %v442 = vrot.slane %v417, 1
      %v443 = vrot.slane %v418, 1
      %v444 = vsel %vm441, %v442, %v443
      %v445 = vrot.slane %v419, 1
      %v446 = vsel %vm441, %v443, %v445
      %v447 = vrot.slane %v420, 1
      %v448 = vrot.slane %v421, 1
      %v449 = vsel %vm441, %v447, %v448
      %v450 = vrot.slane %v422, 1
      %v451 = vsel %vm441, %v448, %v450
      %v452 = vrot.slane %v423, 1
      %v453 = vrot.slane %v424, 1
      %v454 = vsel %vm441, %v452, %v453
      %v455 = vrot.slane %v425, 1
      %v456 = vsel %vm441, %v453, %v455
      %v457 = vrot.slane %v426, 1
      %v458 = vrot.slane %v427, 1
      %v459 = vsel %vm441, %v457, %v458
      %v460 = vrot.slane %v428, 1
      %v461 = vsel %vm441, %v458, %v460
      %v470 = vadd.f32 %v393, %v444
      %v471 = vadd.f32 %v394, %v446
      %v472 = vadd.f32 %v395, %v449
      %v473 = vadd.f32 %v396, %v451
      %v474 = vadd.f32 %v397, %v454
      %v475 = vadd.f32 %v398, %v456
      %v476 = vadd.f32 %v399, %v459
      %v477 = vadd.f32 %v400, %v461
      %478 = vrot.lane.b32.xlu0 %v401, 127
      %v479 = vpop.permute.xlu0 %478
      %480 = vrot.lane.b32.xlu0 %v402, 127
      %v481 = vpop.permute.xlu0 %480
      %482 = vrot.lane.b32.xlu0 %v403, 127
      %v483 = vpop.permute.xlu0 %482
      %484 = vrot.lane.b32.xlu0 %v404, 127
      %v485 = vpop.permute.xlu0 %484
      %s486 = vtos %v479
      %v487 = vstv %s486
      %s489 = vtos %v481
      %v490 = vstv %s489
      %s492 = vtos %v483
      %v493 = vstv %s492
      %s495 = vtos %v485
      %v496 = vstv %s495
      %v498 = vmul.f32 %v225, %v487
      %v499 = vmul.f32 %v226, %v487
      %v500 = vmul.f32 %v227, %v487
      %v501 = vmul.f32 %v228, %v490
      %v502 = vmul.f32 %v229, %v490
      %v503 = vmul.f32 %v230, %v490
      %v504 = vmul.f32 %v231, %v493
      %v505 = vmul.f32 %v232, %v493
      %v506 = vmul.f32 %v233, %v493
      %v507 = vmul.f32 %v234, %v496
      %v508 = vmul.f32 %v235, %v496
      %v509 = vmul.f32 %v236, %v496
      %v522 = vrot.slane %v498, 1
      %v523 = vrot.slane %v499, 1
      %v524 = vsel %vm441, %v522, %v523
      %v525 = vrot.slane %v500, 1
      %v526 = vsel %vm441, %v523, %v525
      %v527 = vrot.slane %v501, 1
      %v528 = vrot.slane %v502, 1
      %v529 = vsel %vm441, %v527, %v528
      %v530 = vrot.slane %v503, 1
      %v531 = vsel %vm441, %v528, %v530
      %v532 = vrot.slane %v504, 1
      %v533 = vrot.slane %v505, 1
      %v534 = vsel %vm441, %v532, %v533
      %v535 = vrot.slane %v506, 1
      %v536 = vsel %vm441, %v533, %v535
      %v537 = vrot.slane %v507, 1
      %v538 = vrot.slane %v508, 1
      %v539 = vsel %vm441, %v537, %v538
      %v540 = vrot.slane %v509, 1
      %v541 = vsel %vm441, %v538, %v540
      %542 = vrot.lane.b32.xlu0 %v524, 127
      %v543 = vpop.permute.xlu0 %542
      %544 = vrot.lane.b32.xlu0 %v526, 127
      %v545 = vpop.permute.xlu0 %544
      %546 = vrot.lane.b32.xlu0 %v529, 127
      %v547 = vpop.permute.xlu0 %546
      %548 = vrot.lane.b32.xlu0 %v531, 127
      %v549 = vpop.permute.xlu0 %548
      %550 = vrot.lane.b32.xlu0 %v534, 127
      %v551 = vpop.permute.xlu0 %550
      %552 = vrot.lane.b32.xlu0 %v536, 127
      %v553 = vpop.permute.xlu0 %552
      %554 = vrot.lane.b32.xlu0 %v539, 127
      %v555 = vpop.permute.xlu0 %554
      %556 = vrot.lane.b32.xlu0 %v541, 127
      %v557 = vpop.permute.xlu0 %556
      %v566 = vadd.f32 %v470, %v543
      %v567 = vadd.f32 %v471, %v545
      %v568 = vadd.f32 %v472, %v547
      %v569 = vadd.f32 %v473, %v549
      %v570 = vadd.f32 %v474, %v551
      %v571 = vadd.f32 %v475, %v553
      %v572 = vadd.f32 %v476, %v555
      %v573 = vadd.f32 %v477, %v557
      %574 = vrot.lane.b32.xlu0 %v401, 126
      %v575 = vpop.permute.xlu0 %574
      %576 = vrot.lane.b32.xlu0 %v402, 126
      %v577 = vpop.permute.xlu0 %576
      %578 = vrot.lane.b32.xlu0 %v403, 126
      %v579 = vpop.permute.xlu0 %578
      %580 = vrot.lane.b32.xlu0 %v404, 126
      %v581 = vpop.permute.xlu0 %580
      %s582 = vtos %v575
      %v583 = vstv %s582
      %s585 = vtos %v577
      %v586 = vstv %s585
      %s588 = vtos %v579
      %v589 = vstv %s588
      %s591 = vtos %v581
      %v592 = vstv %s591
      %v594 = vmul.f32 %v225, %v583
      %v595 = vmul.f32 %v226, %v583
      %v596 = vmul.f32 %v227, %v583
      %v597 = vmul.f32 %v228, %v586
      %v598 = vmul.f32 %v229, %v586
      %v599 = vmul.f32 %v230, %v586
      %v600 = vmul.f32 %v231, %v589
      %v601 = vmul.f32 %v232, %v589
      %v602 = vmul.f32 %v233, %v589
      %v603 = vmul.f32 %v234, %v592
      %v604 = vmul.f32 %v235, %v592
      %v605 = vmul.f32 %v236, %v592
      %v618 = vrot.slane %v594, 1
      %v619 = vrot.slane %v595, 1
      %v620 = vsel %vm441, %v618, %v619
      %v621 = vrot.slane %v596, 1
      %v622 = vsel %vm441, %v619, %v621
      %v623 = vrot.slane %v597, 1
      %v624 = vrot.slane %v598, 1
      %v625 = vsel %vm441, %v623, %v624
      %v626 = vrot.slane %v599, 1
      %v627 = vsel %vm441, %v624, %v626
      %v628 = vrot.slane %v600, 1
      %v629 = vrot.slane %v601, 1
      %v630 = vsel %vm441, %v628, %v629
      %v631 = vrot.slane %v602, 1
      %v632 = vsel %vm441, %v629, %v631
      %v633 = vrot.slane %v603, 1
      %v634 = vrot.slane %v604, 1
      %v635 = vsel %vm441, %v633, %v634
      %v636 = vrot.slane %v605, 1
      %v637 = vsel %vm441, %v634, %v636
      %638 = vrot.lane.b32.xlu0 %v620, 126
      %v639 = vpop.permute.xlu0 %638
      %640 = vrot.lane.b32.xlu0 %v622, 126
      %v641 = vpop.permute.xlu0 %640
      %642 = vrot.lane.b32.xlu0 %v625, 126
      %v643 = vpop.permute.xlu0 %642
      %644 = vrot.lane.b32.xlu0 %v627, 126
      %v645 = vpop.permute.xlu0 %644
      %646 = vrot.lane.b32.xlu0 %v630, 126
      %v647 = vpop.permute.xlu0 %646
      %648 = vrot.lane.b32.xlu0 %v632, 126
      %v649 = vpop.permute.xlu0 %648
      %650 = vrot.lane.b32.xlu0 %v635, 126
      %v651 = vpop.permute.xlu0 %650
      %652 = vrot.lane.b32.xlu0 %v637, 126
      %v653 = vpop.permute.xlu0 %652
      %v662 = vadd.f32 %v566, %v639
      %v663 = vadd.f32 %v567, %v641
      %v664 = vadd.f32 %v568, %v643
      %v665 = vadd.f32 %v569, %v645
      %v666 = vadd.f32 %v570, %v647
      %v667 = vadd.f32 %v571, %v649
      %v668 = vadd.f32 %v572, %v651
      %v669 = vadd.f32 %v573, %v653
      %v670 = vrot.slane %v237, 2
      %v671 = vrot.slane %v238, 2
      %v672 = vrot.slane %v239, 2
      %v673 = vrot.slane %v240, 2
      %s674 = vtos %v670
      %v675 = vstv %s674
      %s677 = vtos %v671
      %v678 = vstv %s677
      %s680 = vtos %v672
      %v681 = vstv %s680
      %s683 = vtos %v673
      %v684 = vstv %s683
      %v686 = vmul.f32 %v225, %v675
      %v687 = vmul.f32 %v226, %v675
      %v688 = vmul.f32 %v227, %v675
      %v689 = vmul.f32 %v228, %v678
      %v690 = vmul.f32 %v229, %v678
      %v691 = vmul.f32 %v230, %v678
      %v692 = vmul.f32 %v231, %v681
      %v693 = vmul.f32 %v232, %v681
      %v694 = vmul.f32 %v233, %v681
      %v695 = vmul.f32 %v234, %v684
      %v696 = vmul.f32 %v235, %v684
      %v697 = vmul.f32 %v236, %v684
      %vm710 = vcmask 1045504
      %v711 = vrot.slane %v686, 2
      %v712 = vrot.slane %v687, 2
      %v713 = vsel %vm710, %v711, %v712
      %v714 = vrot.slane %v688, 2
      %v715 = vsel %vm710, %v712, %v714
      %v716 = vrot.slane %v689, 2
      %v717 = vrot.slane %v690, 2
      %v718 = vsel %vm710, %v716, %v717
      %v719 = vrot.slane %v691, 2
      %v720 = vsel %vm710, %v717, %v719
      %v721 = vrot.slane %v692, 2
      %v722 = vrot.slane %v693, 2
      %v723 = vsel %vm710, %v721, %v722
      %v724 = vrot.slane %v694, 2
      %v725 = vsel %vm710, %v722, %v724
      %v726 = vrot.slane %v695, 2
      %v727 = vrot.slane %v696, 2
      %v728 = vsel %vm710, %v726, %v727
      %v729 = vrot.slane %v697, 2
      %v730 = vsel %vm710, %v727, %v729
      %v739 = vadd.f32 %v662, %v713
      %v740 = vadd.f32 %v663, %v715
      %v741 = vadd.f32 %v664, %v718
      %v742 = vadd.f32 %v665, %v720
      %v743 = vadd.f32 %v666, %v723
      %v744 = vadd.f32 %v667, %v725
      %v745 = vadd.f32 %v668, %v728
      %v746 = vadd.f32 %v669, %v730
      %747 = vrot.lane.b32.xlu0 %v670, 127
      %v748 = vpop.permute.xlu0 %747
      %749 = vrot.lane.b32.xlu0 %v671, 127
      %v750 = vpop.permute.xlu0 %749
      %751 = vrot.lane.b32.xlu0 %v672, 127
      %v752 = vpop.permute.xlu0 %751
      %753 = vrot.lane.b32.xlu0 %v673, 127
      %v754 = vpop.permute.xlu0 %753
      %s755 = vtos %v748
      %v756 = vstv %s755
      %s758 = vtos %v750
      %v759 = vstv %s758
      %s761 = vtos %v752
      %v762 = vstv %s761
      %s764 = vtos %v754
      %v765 = vstv %s764
      %v767 = vmul.f32 %v225, %v756
      %v768 = vmul.f32 %v226, %v756
      %v769 = vmul.f32 %v227, %v756
      %v770 = vmul.f32 %v228, %v759
      %v771 = vmul.f32 %v229, %v759
      %v772 = vmul.f32 %v230, %v759
      %v773 = vmul.f32 %v231, %v762
      %v774 = vmul.f32 %v232, %v762
      %v775 = vmul.f32 %v233, %v762
      %v776 = vmul.f32 %v234, %v765
      %v777 = vmul.f32 %v235, %v765
      %v778 = vmul.f32 %v236, %v765
      %v791 = vrot.slane %v767, 2
      %v792 = vrot.slane %v768, 2
      %v793 = vsel %vm710, %v791, %v792
      %v794 = vrot.slane %v769, 2
      %v795 = vsel %vm710, %v792, %v794
      %v796 = vrot.slane %v770, 2
      %v797 = vrot.slane %v771, 2
      %v798 = vsel %vm710, %v796, %v797
      %v799 = vrot.slane %v772, 2
      %v800 = vsel %vm710, %v797, %v799
      %v801 = vrot.slane %v773, 2
      %v802 = vrot.slane %v774, 2
      %v803 = vsel %vm710, %v801, %v802
      %v804 = vrot.slane %v775, 2
      %v805 = vsel %vm710, %v802, %v804
      %v806 = vrot.slane %v776, 2
      %v807 = vrot.slane %v777, 2
      %v808 = vsel %vm710, %v806, %v807
      %v809 = vrot.slane %v778, 2
      %v810 = vsel %vm710, %v807, %v809
      %811 = vrot.lane.b32.xlu0 %v793, 127
      %v812 = vpop.permute.xlu0 %811
      %813 = vrot.lane.b32.xlu0 %v795, 127
      %v814 = vpop.permute.xlu0 %813
      %815 = vrot.lane.b32.xlu0 %v798, 127
      %v816 = vpop.permute.xlu0 %815
      %817 = vrot.lane.b32.xlu0 %v800, 127
      %v818 = vpop.permute.xlu0 %817
      %819 = vrot.lane.b32.xlu0 %v803, 127
      %v820 = vpop.permute.xlu0 %819
      %821 = vrot.lane.b32.xlu0 %v805, 127
      %v822 = vpop.permute.xlu0 %821
      %823 = vrot.lane.b32.xlu0 %v808, 127
      %v824 = vpop.permute.xlu0 %823
      %825 = vrot.lane.b32.xlu0 %v810, 127
      %v826 = vpop.permute.xlu0 %825
      %v835 = vadd.f32 %v739, %v812
      %v836 = vadd.f32 %v740, %v814
      %v837 = vadd.f32 %v741, %v816
      %v838 = vadd.f32 %v742, %v818
      %v839 = vadd.f32 %v743, %v820
      %v840 = vadd.f32 %v744, %v822
      %v841 = vadd.f32 %v745, %v824
      %v842 = vadd.f32 %v746, %v826
      %843 = vrot.lane.b32.xlu0 %v670, 126
      %v844 = vpop.permute.xlu0 %843
      %845 = vrot.lane.b32.xlu0 %v671, 126
      %v846 = vpop.permute.xlu0 %845
      %847 = vrot.lane.b32.xlu0 %v672, 126
      %v848 = vpop.permute.xlu0 %847
      %849 = vrot.lane.b32.xlu0 %v673, 126
      %v850 = vpop.permute.xlu0 %849
      %s851 = vtos %v844
      %v852 = vstv %s851
      %s854 = vtos %v846
      %v855 = vstv %s854
      %s857 = vtos %v848
      %v858 = vstv %s857
      %s860 = vtos %v850
      %v861 = vstv %s860
      %v863 = vmul.f32 %v225, %v852
      %v864 = vmul.f32 %v226, %v852
      %v865 = vmul.f32 %v227, %v852
      %v866 = vmul.f32 %v228, %v855
      %v867 = vmul.f32 %v229, %v855
      %v868 = vmul.f32 %v230, %v855
      %v869 = vmul.f32 %v231, %v858
      %v870 = vmul.f32 %v232, %v858
      %v871 = vmul.f32 %v233, %v858
      %v872 = vmul.f32 %v234, %v861
      %v873 = vmul.f32 %v235, %v861
      %v874 = vmul.f32 %v236, %v861
      %v887 = vrot.slane %v863, 2
      %v888 = vrot.slane %v864, 2
      %v889 = vsel %vm710, %v887, %v888
      %v890 = vrot.slane %v865, 2
      %v891 = vsel %vm710, %v888, %v890
      %v892 = vrot.slane %v866, 2
      %v893 = vrot.slane %v867, 2
      %v894 = vsel %vm710, %v892, %v893
      %v895 = vrot.slane %v868, 2
      %v896 = vsel %vm710, %v893, %v895
      %v897 = vrot.slane %v869, 2
      %v898 = vrot.slane %v870, 2
      %v899 = vsel %vm710, %v897, %v898
      %v900 = vrot.slane %v871, 2
      %v901 = vsel %vm710, %v898, %v900
      %v902 = vrot.slane %v872, 2
      %v903 = vrot.slane %v873, 2
      %v904 = vsel %vm710, %v902, %v903
      %v905 = vrot.slane %v874, 2
      %v906 = vsel %vm710, %v903, %v905
      %907 = vrot.lane.b32.xlu0 %v889, 126
      %v908 = vpop.permute.xlu0 %907
      %909 = vrot.lane.b32.xlu0 %v891, 126
      %v910 = vpop.permute.xlu0 %909
      %911 = vrot.lane.b32.xlu0 %v894, 126
      %v912 = vpop.permute.xlu0 %911
      %913 = vrot.lane.b32.xlu0 %v896, 126
      %v914 = vpop.permute.xlu0 %913
      %915 = vrot.lane.b32.xlu0 %v899, 126
      %v916 = vpop.permute.xlu0 %915
      %917 = vrot.lane.b32.xlu0 %v901, 126
      %v918 = vpop.permute.xlu0 %917
      %919 = vrot.lane.b32.xlu0 %v904, 126
      %v920 = vpop.permute.xlu0 %919
      %921 = vrot.lane.b32.xlu0 %v906, 126
      %v922 = vpop.permute.xlu0 %921
      %v931 = vadd.f32 %v835, %v908
      %v932 = vadd.f32 %v836, %v910
      %v933 = vadd.f32 %v837, %v912
      %v934 = vadd.f32 %v838, %v914
      %v935 = vadd.f32 %v839, %v916
      %v936 = vadd.f32 %v840, %v918
      %v937 = vadd.f32 %v841, %v920
      %v938 = vadd.f32 %v842, %v922
      %v943 = vrot.slane %v933, 7
      %vm944 = vcmask 1041409
      %v945 = vsel %vm944, %v943, %v931
      %vm946 = vcmask 1045509
      %v947 = vsel %vm946, %v943, %v945
      %v948 = vrot.slane %v935, 6
      %vm949 = vcmask 1042434
      %v950 = vsel %vm949, %v948, %v947
      %vm951 = vcmask 1046534
      %v952 = vsel %vm951, %v948, %v950
      %v953 = vrot.slane %v937, 5
      %vm954 = vcmask 1043459
      %v955 = vsel %vm954, %v953, %v952
      %vm956 = vcmask 1047559
      %v957 = vsel %vm956, %v953, %v955
      %vm959 = vcmask 125952
      %960 = vst.msk [vmem:[#allocation2] sm:$0xf] %vm959, %v957
      %v961 = vrot.slane %v931, 1
      %v962 = vsel %vm944, %v933, %v961
      %v963 = vsel %vm946, %v933, %v962
      %v964 = vrot.slane %v935, 7
      %v965 = vsel %vm949, %v964, %v963
      %v966 = vsel %vm951, %v964, %v965
      %v967 = vrot.slane %v937, 6
      %v968 = vsel %vm954, %v967, %v966
      %v969 = vsel %vm956, %v967, %v968
      %970 = vrot.lane.b32.xlu0 %v969, 16
      %v971 = vpop.permute.xlu0 %970
      %vm973 = vcmask 257152
      %974 = vst.msk [vmem:[#allocation2] sm:$0xf] %vm973, %v971
      %v975 = vrot.slane %v931, 2
      %v976 = vrot.slane %v933, 1
      %v977 = vsel %vm944, %v976, %v975
      %v978 = vsel %vm946, %v976, %v977
      %v979 = vsel %vm949, %v935, %v978
      %v980 = vsel %vm951, %v935, %v979
      %v981 = vrot.slane %v937, 7
      %v982 = vsel %vm954, %v981, %v980
      %v983 = vsel %vm956, %v981, %v982
      %984 = vrot.lane.b32.xlu0 %v983, 32
      %v985 = vpop.permute.xlu0 %984
      %vm987 = vcmask 388352
      %988 = vst.msk [vmem:[#allocation2] sm:$0xf] %vm987, %v985
      %v989 = vrot.slane %v931, 3
      %v990 = vrot.slane %v933, 2
      %v991 = vsel %vm944, %v990, %v989
      %v992 = vsel %vm946, %v990, %v991
      %v993 = vrot.slane %v935, 1
      %v994 = vsel %vm949, %v993, %v992
      %v995 = vsel %vm951, %v993, %v994
      %v996 = vsel %vm954, %v937, %v995
      %v997 = vsel %vm956, %v937, %v996
      %998 = vrot.lane.b32.xlu0 %v997, 48
      %v999 = vpop.permute.xlu0 %998
      %vm1001 = vcmask 519552
      %1002 = vst.msk [vmem:[#allocation2] sm:$0xf] %vm1001, %v999
      %v1003 = vcombine.high %v931, %v931
      %v1004 = vcombine.high %v933, %v933
      %v1005 = vcombine.high %v935, %v935
      %v1006 = vcombine.high %v937, %v937
      %v1007 = vrot.slane %v1004, 7
      %v1008 = vsel %vm944, %v1007, %v1003
      %v1009 = vsel %vm946, %v1007, %v1008
      %v1010 = vrot.slane %v1005, 6
      %v1011 = vsel %vm949, %v1010, %v1009
      %v1012 = vsel %vm951, %v1010, %v1011
      %v1013 = vrot.slane %v1006, 5
      %v1014 = vsel %vm954, %v1013, %v1012
      %v1015 = vsel %vm956, %v1013, %v1014
      %1016 = vrot.lane.b32.xlu0 %v1015, 64
      %v1017 = vpop.permute.xlu0 %1016
      %vm1019 = vcmask 650752
      %1020 = vst.msk [vmem:[#allocation2] sm:$0xf] %vm1019, %v1017
      %v1021 = vrot.slane %v1003, 1
      %v1022 = vsel %vm944, %v1004, %v1021
      %v1023 = vsel %vm946, %v1004, %v1022
      %v1024 = vrot.slane %v1005, 7
      %v1025 = vsel %vm949, %v1024, %v1023
      %v1026 = vsel %vm951, %v1024, %v1025
      %v1027 = vrot.slane %v1006, 6
      %v1028 = vsel %vm954, %v1027, %v1026
      %v1029 = vsel %vm956, %v1027, %v1028
      %1030 = vrot.lane.b32.xlu0 %v1029, 80
      %v1031 = vpop.permute.xlu0 %1030
      %vm1033 = vcmask 781952
      %1034 = vst.msk [vmem:[#allocation2] sm:$0xf] %vm1033, %v1031
      %v1035 = vrot.slane %v1003, 2
      %v1036 = vrot.slane %v1004, 1
      %v1037 = vsel %vm944, %v1036, %v1035
      %v1038 = vsel %vm946, %v1036, %v1037
      %v1039 = vsel %vm949, %v1005, %v1038
      %v1040 = vsel %vm951, %v1005, %v1039
      %v1041 = vrot.slane %v1006, 7
      %v1042 = vsel %vm954, %v1041, %v1040
      %v1043 = vsel %vm956, %v1041, %v1042
      %1044 = vrot.lane.b32.xlu0 %v1043, 96
      %v1045 = vpop.permute.xlu0 %1044
      %vm1047 = vcmask 913152
      %1048 = vst.msk [vmem:[#allocation2] sm:$0xf] %vm1047, %v1045
      %v1049 = vrot.slane %v1003, 3
      %v1050 = vrot.slane %v1004, 2
      %v1051 = vsel %vm944, %v1050, %v1049
      %v1052 = vsel %vm946, %v1050, %v1051
      %v1053 = vrot.slane %v1005, 1
      %v1054 = vsel %vm949, %v1053, %v1052
      %v1055 = vsel %vm951, %v1053, %v1054
      %v1056 = vsel %vm954, %v1006, %v1055
      %v1057 = vsel %vm956, %v1006, %v1056
      %1058 = vrot.lane.b32.xlu0 %v1057, 112
      %v1059 = vpop.permute.xlu0 %1058
      %vm1061 = vcmask 1044352
      %1062 = vst.msk [vmem:[#allocation2] sm:$0xf] %vm1061, %v1059
      %v1067 = vrot.slane %v934, 7
      %v1068 = vsel %vm944, %v1067, %v932
      %v1069 = vsel %vm946, %v1067, %v1068
      %v1070 = vrot.slane %v936, 6
      %v1071 = vsel %vm949, %v1070, %v1069
      %v1072 = vsel %vm951, %v1070, %v1071
      %v1073 = vrot.slane %v938, 5
      %v1074 = vsel %vm954, %v1073, %v1072
      %v1075 = vsel %vm956, %v1073, %v1074
      %1077 = vst.msk [vmem:[#allocation2 + $0x4] sm:$0xf] %vm959, %v1075
      %v1078 = vrot.slane %v932, 1
      %v1079 = vsel %vm944, %v934, %v1078
      %v1080 = vsel %vm946, %v934, %v1079
      %v1081 = vrot.slane %v936, 7
      %v1082 = vsel %vm949, %v1081, %v1080
      %v1083 = vsel %vm951, %v1081, %v1082
      %v1084 = vrot.slane %v938, 6
      %v1085 = vsel %vm954, %v1084, %v1083
      %v1086 = vsel %vm956, %v1084, %v1085
      %1087 = vrot.lane.b32.xlu0 %v1086, 16
      %v1088 = vpop.permute.xlu0 %1087
      %1090 = vst.msk [vmem:[#allocation2 + $0x4] sm:$0xf] %vm973, %v1088
      %v1091 = vrot.slane %v932, 2
      %v1092 = vrot.slane %v934, 1
      %v1093 = vsel %vm944, %v1092, %v1091
      %v1094 = vsel %vm946, %v1092, %v1093
      %v1095 = vsel %vm949, %v936, %v1094
      %v1096 = vsel %vm951, %v936, %v1095
      %v1097 = vrot.slane %v938, 7
      %v1098 = vsel %vm954, %v1097, %v1096
      %v1099 = vsel %vm956, %v1097, %v1098
      %1100 = vrot.lane.b32.xlu0 %v1099, 32
      %v1101 = vpop.permute.xlu0 %1100
      %1103 = vst.msk [vmem:[#allocation2 + $0x4] sm:$0xf] %vm987, %v1101
      %v1104 = vrot.slane %v932, 3
      %v1105 = vrot.slane %v934, 2
      %v1106 = vsel %vm944, %v1105, %v1104
      %v1107 = vsel %vm946, %v1105, %v1106
      %v1108 = vrot.slane %v936, 1
      %v1109 = vsel %vm949, %v1108, %v1107
      %v1110 = vsel %vm951, %v1108, %v1109
      %v1111 = vsel %vm954, %v938, %v1110
      %v1112 = vsel %vm956, %v938, %v1111
      %1113 = vrot.lane.b32.xlu0 %v1112, 48
      %v1114 = vpop.permute.xlu0 %1113
      %1116 = vst.msk [vmem:[#allocation2 + $0x4] sm:$0xf] %vm1001, %v1114
      %v1117 = vcombine.high %v932, %v932
      %v1118 = vcombine.high %v934, %v934
      %v1119 = vcombine.high %v936, %v936
      %v1120 = vcombine.high %v938, %v938
      %v1121 = vrot.slane %v1118, 7
      %v1122 = vsel %vm944, %v1121, %v1117
      %v1123 = vsel %vm946, %v1121, %v1122
      %v1124 = vrot.slane %v1119, 6
      %v1125 = vsel %vm949, %v1124, %v1123
      %v1126 = vsel %vm951, %v1124, %v1125
      %v1127 = vrot.slane %v1120, 5
      %v1128 = vsel %vm954, %v1127, %v1126
      %v1129 = vsel %vm956, %v1127, %v1128
      %1130 = vrot.lane.b32.xlu0 %v1129, 64
      %v1131 = vpop.permute.xlu0 %1130
      %1133 = vst.msk [vmem:[#allocation2 + $0x4] sm:$0xf] %vm1019, %v1131
      %v1134 = vrot.slane %v1117, 1
      %v1135 = vsel %vm944, %v1118, %v1134
      %v1136 = vsel %vm946, %v1118, %v1135
      %v1137 = vrot.slane %v1119, 7
      %v1138 = vsel %vm949, %v1137, %v1136
      %v1139 = vsel %vm951, %v1137, %v1138
      %v1140 = vrot.slane %v1120, 6
      %v1141 = vsel %vm954, %v1140, %v1139
      %v1142 = vsel %vm956, %v1140, %v1141
      %1143 = vrot.lane.b32.xlu0 %v1142, 80
      %v1144 = vpop.permute.xlu0 %1143
      %1146 = vst.msk [vmem:[#allocation2 + $0x4] sm:$0xf] %vm1033, %v1144
      %v1147 = vrot.slane %v1117, 2
      %v1148 = vrot.slane %v1118, 1
      %v1149 = vsel %vm944, %v1148, %v1147
      %v1150 = vsel %vm946, %v1148, %v1149
      %v1151 = vsel %vm949, %v1119, %v1150
      %v1152 = vsel %vm951, %v1119, %v1151
      %v1153 = vrot.slane %v1120, 7
      %v1154 = vsel %vm954, %v1153, %v1152
      %v1155 = vsel %vm956, %v1153, %v1154
      %1156 = vrot.lane.b32.xlu0 %v1155, 96
      %v1157 = vpop.permute.xlu0 %1156
      %1159 = vst.msk [vmem:[#allocation2 + $0x4] sm:$0xf] %vm1047, %v1157
      %v1160 = vrot.slane %v1117, 3
      %v1161 = vrot.slane %v1118, 2
      %v1162 = vsel %vm944, %v1161, %v1160
      %v1163 = vsel %vm946, %v1161, %v1162
      %v1164 = vrot.slane %v1119, 1
      %v1165 = vsel %vm949, %v1164, %v1163
      %v1166 = vsel %vm951, %v1164, %v1165
      %v1167 = vsel %vm954, %v1120, %v1166
      %v1168 = vsel %vm956, %v1120, %v1167
      %1169 = vrot.lane.b32.xlu0 %v1168, 112
      %v1170 = vpop.permute.xlu0 %1169
      %1172 = vst.msk [vmem:[#allocation2 + $0x4] sm:$0xf] %vm1061, %v1170
      %v1173 = vld [vmem:[#allocation2] sm:$0xff]
      %v1174 = vld [vmem:[%s2] sm:$0xf]
      %1176 = vset.pattern.permute.xlu0 0
      %1177 = vperm.xlu0 %1176, %v1174
      %v1178 = vpop.permute.xlu0 %1177
      %v1180 = vunpack.c.l.s4 839922192
      %v1181 = vunpack.c.0.s8 %v1180
      %v1182 = vlaneseq
      %v1183 = vshrl.u32 %v1182, 7
      %v1184 = vsub.s32 %v1181, %v1183
      %v1185 = vrot.slane %v1178, %v1184
      %v1187 = vadd.f32 %v1173, %v1185
      %vm1188 = vcmp.ge.f32.partialorder %v1187, 0.0
      %v1189 = vmul.f32 %v1187, 0.01
      %v1190 = vsel %vm1188, %v1187, %v1189
      %v1191 = vld [vmem:[%s3] sm:$0xff]
      %v1192 = vld [vmem:[%s4] sm:$0xff]
      %1194 = vset.pattern.permute.xlu0 0
      %1195 = vperm.xlu0 %1194, %v1192
      %v1196 = vpop.permute.xlu0 %1195
      %v1199 = vcombine.high %v1190, %v1190
      %vm1200 = vcmask 31744
      %v1202 = vsel %vm1200, %v1191, 0
      %vm1204 = vcmask 1043456
      %v1205 = vsel %vm1204, %v1190, 0
      %v1207 = vsel %vm1204, %v1199, 0
      %v1209 = vand.u32 %v1207, 4294901760
      %1210 = vmatprep.subr.mxu0 %v1209
      %v1211 = vand.u32 %v1205, 4294901760
      %1212 = vmatpush1.msra.mxu0 %v1211
      %1213 = vmatprep.subr.mxu0 0.0
      %1214 = vmatpush1.msra.mxu0 0.0
      %1215 = vmatprep.subr.mxu0 0.0
      %1216 = vmatpush1.msra.mxu0 0.0
      %1217 = vmatprep.subr.mxu0 0.0
      %1218 = vmatpush1.msra.mxu0 0.0
      %1219 = vmatprep.subr.mxu0 0.0
      %1220 = vmatpush1.msra.mxu0 0.0
      %1221 = vmatprep.subr.mxu0 0.0
      %1222 = vmatpush1.msra.mxu0 0.0
      %1223 = vmatprep.subr.mxu0 0.0
      %1224 = vmatpush1.msra.mxu0 0.0
      %1225 = vmatprep.subr.mxu0 0.0
      %1226 = vmatpush1.msra.mxu0 0.0
      %1227 = vmatprep.subr.mxu0 0.0
      %1228 = vmatpush1.msra.mxu0 0.0
      %1229 = vmatprep.subr.mxu0 0.0
      %1230 = vmatpush1.msra.mxu0 0.0
      %1231 = vmatprep.subr.mxu0 0.0
      %1232 = vmatpush1.msra.mxu0 0.0
      %1233 = vmatprep.subr.mxu0 0.0
      %1234 = vmatpush1.msra.mxu0 0.0
      %1235 = vmatprep.subr.mxu0 0.0
      %1236 = vmatpush1.msra.mxu0 0.0
      %1237 = vmatprep.subr.mxu0 0.0
      %1238 = vmatpush1.msra.mxu0 0.0
      %1239 = vmatprep.subr.mxu0 0.0
      %1240 = vmatpush1.msra.mxu0 0.0
      %1241 = vmatprep.subr.mxu0 0.0
      %1242 = vmatpush1.msra.mxu0 0.0
      %1243 = vmatprep.subr.mxu0 0.0
      %1244 = vmatpush1.msra.mxu0 0.0
      %1245 = vmatprep.subr.mxu0 0.0
      %1246 = vmatpush1.msra.mxu0 0.0
      %1247 = vmatprep.subr.mxu0 0.0
      %1248 = vmatpush1.msra.mxu0 0.0
      %1249 = vmatprep.subr.mxu0 0.0
      %1250 = vmatpush1.msra.mxu0 0.0
      %1251 = vmatprep.subr.mxu0 0.0
      %1252 = vmatpush1.msra.mxu0 0.0
      %1253 = vmatprep.subr.mxu0 0.0
      %1254 = vmatpush1.msra.mxu0 0.0
      %1255 = vmatprep.subr.mxu0 0.0
      %1256 = vmatpush1.msra.mxu0 0.0
      %1257 = vmatprep.subr.mxu0 0.0
      %1258 = vmatpush1.msra.mxu0 0.0
      %1259 = vmatprep.subr.mxu0 0.0
      %1260 = vmatpush1.msra.mxu0 0.0
      %1261 = vmatprep.subr.mxu0 0.0
      %1262 = vmatpush1.msra.mxu0 0.0
      %1263 = vmatprep.subr.mxu0 0.0
      %1264 = vmatpush1.msra.mxu0 0.0
      %1265 = vmatprep.subr.mxu0 0.0
      %1266 = vmatpush1.msra.mxu0 0.0
      %1267 = vmatprep.subr.mxu0 0.0
      %1268 = vmatpush1.msra.mxu0 0.0
      %1269 = vmatprep.subr.mxu0 0.0
      %1270 = vmatpush1.msra.mxu0 0.0
      %1271 = vmatprep.subr.mxu0 0.0
      %1272 = vmatpush1.msra.mxu0 0.0
      %1273 = vmatprep.subr.mxu0 0.0
      %1274 = vmatpush1.msra.mxu0 0.0
      %1275 = vmatprep.mubr.f32.mxu0 0.0
      %v1276 = vand.u32 %v1202, 4294901760
      %v1277 = vsub.f32 %v1202, %v1276
      %v1278 = vand.u32 %v1277, 4294901760
      %v1279 = vsub.f32 %v1277, %v1278
      %v1280 = vand.u32 %v1279, 4294901760
      %1281 = vmatmul.mubr.f32.gmra.mrb[0].mxu0 %v1280
      %v1282 = vpop.f32.mrb[0].mxu0
      %v1283 = vadd.f32 %v1196, %v1282
      %v1284 = vpop.f32.mrb[0].mxu0
      %v1285 = vadd.f32 %v1196, %v1284
      %1286 = vdwg.mxu0
      %v1287 = vand.u32 %v1207, 4294901760
      %v1288 = vsub.f32 %v1207, %v1287
      %v1289 = vand.u32 %v1288, 4294901760
      %v1290 = vsub.f32 %v1288, %v1289
      %v1291 = vand.u32 %v1290, 4294901760
      %1292 = vmatprep.subr.mxu0 %v1291
      %v1293 = vand.u32 %v1205, 4294901760
      %v1294 = vsub.f32 %v1205, %v1293
      %v1295 = vand.u32 %v1294, 4294901760
      %v1296 = vsub.f32 %v1294, %v1295
      %v1297 = vand.u32 %v1296, 4294901760
      %1298 = vmatpush1.msra.mxu0 %v1297
      %1299 = vmatprep.subr.mxu0 0.0
      %1300 = vmatpush1.msra.mxu0 0.0
      %1301 = vmatprep.subr.mxu0 0.0
      %1302 = vmatpush1.msra.mxu0 0.0
      %1303 = vmatprep.subr.mxu0 0.0
      %1304 = vmatpush1.msra.mxu0 0.0
      %1305 = vmatprep.subr.mxu0 0.0
      %1306 = vmatpush1.msra.mxu0 0.0
      %1307 = vmatprep.subr.mxu0 0.0
      %1308 = vmatpush1.msra.mxu0 0.0
      %1309 = vmatprep.subr.mxu0 0.0
      %1310 = vmatpush1.msra.mxu0 0.0
      %1311 = vmatprep.subr.mxu0 0.0
      %1312 = vmatpush1.msra.mxu0 0.0
      %1313 = vmatprep.subr.mxu0 0.0
      %1314 = vmatpush1.msra.mxu0 0.0
      %1315 = vmatprep.subr.mxu0 0.0
      %1316 = vmatpush1.msra.mxu0 0.0
      %1317 = vmatprep.subr.mxu0 0.0
      %1318 = vmatpush1.msra.mxu0 0.0
      %1319 = vmatprep.subr.mxu0 0.0
      %1320 = vmatpush1.msra.mxu0 0.0
      %1321 = vmatprep.subr.mxu0 0.0
      %1322 = vmatpush1.msra.mxu0 0.0
      %1323 = vmatprep.subr.mxu0 0.0
      %1324 = vmatpush1.msra.mxu0 0.0
      %1325 = vmatprep.subr.mxu0 0.0
      %1326 = vmatpush1.msra.mxu0 0.0
      %1327 = vmatprep.subr.mxu0 0.0
      %1328 = vmatpush1.msra.mxu0 0.0
      %1329 = vmatprep.subr.mxu0 0.0
      %1330 = vmatpush1.msra.mxu0 0.0
      %1331 = vmatprep.subr.mxu0 0.0
      %1332 = vmatpush1.msra.mxu0 0.0
      %1333 = vmatprep.subr.mxu0 0.0
      %1334 = vmatpush1.msra.mxu0 0.0
      %1335 = vmatprep.subr.mxu0 0.0
      %1336 = vmatpush1.msra.mxu0 0.0
      %1337 = vmatprep.subr.mxu0 0.0
      %1338 = vmatpush1.msra.mxu0 0.0
      %1339 = vmatprep.subr.mxu0 0.0
      %1340 = vmatpush1.msra.mxu0 0.0
      %1341 = vmatprep.subr.mxu0 0.0
      %1342 = vmatpush1.msra.mxu0 0.0
      %1343 = vmatprep.subr.mxu0 0.0
      %1344 = vmatpush1.msra.mxu0 0.0
      %1345 = vmatprep.subr.mxu0 0.0
      %1346 = vmatpush1.msra.mxu0 0.0
      %1347 = vmatprep.subr.mxu0 0.0
      %1348 = vmatpush1.msra.mxu0 0.0
      %1349 = vmatprep.subr.mxu0 0.0
      %1350 = vmatpush1.msra.mxu0 0.0
      %1351 = vmatprep.subr.mxu0 0.0
      %1352 = vmatpush1.msra.mxu0 0.0
      %1353 = vmatprep.subr.mxu0 0.0
      %1354 = vmatpush1.msra.mxu0 0.0
      %1355 = vmatprep.subr.mxu0 0.0
      %1356 = vmatpush1.msra.mxu0 0.0
      %1357 = vmatprep.subr.mxu0 0.0
      %1358 = vmatpush1.msra.mxu0 0.0
      %1359 = vmatprep.subr.mxu0 0.0
      %1360 = vmatpush1.msra.mxu0 0.0
      %1361 = vmatprep.mubr.f32.mxu0 0.0
      %v1362 = vand.u32 %v1202, 4294901760
      %1363 = vmatmul.mubr.f32.gmra.mrb[0].mxu0 %v1362
      %v1364 = vpop.f32.mrb[0].mxu0
      %v1365 = vadd.f32 %v1283, %v1364
      %v1366 = vpop.f32.mrb[0].mxu0
      %v1367 = vadd.f32 %v1285, %v1366
      %1368 = vdwg.mxu0
      %v1369 = vand.u32 %v1207, 4294901760
      %v1370 = vsub.f32 %v1207, %v1369
      %1371 = vmatprep.subr.mxu0 %v1370
      %v1372 = vand.u32 %v1205, 4294901760
      %v1373 = vsub.f32 %v1205, %v1372
      %1374 = vmatpush1.msra.mxu0 %v1373
      %1375 = vmatprep.subr.mxu0 0.0
      %1376 = vmatpush1.msra.mxu0 0.0
      %1377 = vmatprep.subr.mxu0 0.0
      %1378 = vmatpush1.msra.mxu0 0.0
      %1379 = vmatprep.subr.mxu0 0.0
      %1380 = vmatpush1.msra.mxu0 0.0
      %1381 = vmatprep.subr.mxu0 0.0
      %1382 = vmatpush1.msra.mxu0 0.0
      %1383 = vmatprep.subr.mxu0 0.0
      %1384 = vmatpush1.msra.mxu0 0.0
      %1385 = vmatprep.subr.mxu0 0.0
      %1386 = vmatpush1.msra.mxu0 0.0
      %1387 = vmatprep.subr.mxu0 0.0
      %1388 = vmatpush1.msra.mxu0 0.0
      %1389 = vmatprep.subr.mxu0 0.0
      %1390 = vmatpush1.msra.mxu0 0.0
      %1391 = vmatprep.subr.mxu0 0.0
      %1392 = vmatpush1.msra.mxu0 0.0
      %1393 = vmatprep.subr.mxu0 0.0
      %1394 = vmatpush1.msra.mxu0 0.0
      %1395 = vmatprep.subr.mxu0 0.0
      %1396 = vmatpush1.msra.mxu0 0.0
      %1397 = vmatprep.subr.mxu0 0.0
      %1398 = vmatpush1.msra.mxu0 0.0
      %1399 = vmatprep.subr.mxu0 0.0
      %1400 = vmatpush1.msra.mxu0 0.0
      %1401 = vmatprep.subr.mxu0 0.0
      %1402 = vmatpush1.msra.mxu0 0.0
      %1403 = vmatprep.subr.mxu0 0.0
      %1404 = vmatpush1.msra.mxu0 0.0
      %1405 = vmatprep.subr.mxu0 0.0
      %1406 = vmatpush1.msra.mxu0 0.0
      %1407 = vmatprep.subr.mxu0 0.0
      %1408 = vmatpush1.msra.mxu0 0.0
      %1409 = vmatprep.subr.mxu0 0.0
      %1410 = vmatpush1.msra.mxu0 0.0
      %1411 = vmatprep.subr.mxu0 0.0
      %1412 = vmatpush1.msra.mxu0 0.0
      %1413 = vmatprep.subr.mxu0 0.0
      %1414 = vmatpush1.msra.mxu0 0.0
      %1415 = vmatprep.subr.mxu0 0.0
      %1416 = vmatpush1.msra.mxu0 0.0
      %1417 = vmatprep.subr.mxu0 0.0
      %1418 = vmatpush1.msra.mxu0 0.0
      %1419 = vmatprep.subr.mxu0 0.0
      %1420 = vmatpush1.msra.mxu0 0.0
      %1421 = vmatprep.subr.mxu0 0.0
      %1422 = vmatpush1.msra.mxu0 0.0
      %1423 = vmatprep.subr.mxu0 0.0
      %1424 = vmatpush1.msra.mxu0 0.0
      %1425 = vmatprep.subr.mxu0 0.0
      %1426 = vmatpush1.msra.mxu0 0.0
      %1427 = vmatprep.subr.mxu0 0.0
      %1428 = vmatpush1.msra.mxu0 0.0
      %1429 = vmatprep.subr.mxu0 0.0
      %1430 = vmatpush1.msra.mxu0 0.0
      %1431 = vmatprep.subr.mxu0 0.0
      %1432 = vmatpush1.msra.mxu0 0.0
      %1433 = vmatprep.subr.mxu0 0.0
      %1434 = vmatpush1.msra.mxu0 0.0
      %1435 = vmatprep.subr.mxu0 0.0
      %1436 = vmatpush1.msra.mxu0 0.0
      %1437 = vmatprep.mubr.f32.mxu0 0.0
      %v1438 = vand.u32 %v1202, 4294901760
      %v1439 = vsub.f32 %v1202, %v1438
      %1440 = vmatmul.mubr.f32.gmra.mrb[0].mxu0 %v1439
      %v1441 = vpop.f32.mrb[0].mxu0
      %v1442 = vadd.f32 %v1365, %v1441
      %v1443 = vpop.f32.mrb[0].mxu0
      %v1444 = vadd.f32 %v1367, %v1443
      %1445 = vdwg.mxu0
      %v1446 = vand.u32 %v1207, 4294901760
      %1447 = vmatprep.subr.mxu0 %v1446
      %v1448 = vand.u32 %v1205, 4294901760
      %1449 = vmatpush1.msra.mxu0 %v1448
      %1450 = vmatprep.subr.mxu0 0.0
      %1451 = vmatpush1.msra.mxu0 0.0
      %1452 = vmatprep.subr.mxu0 0.0
      %1453 = vmatpush1.msra.mxu0 0.0
      %1454 = vmatprep.subr.mxu0 0.0
      %1455 = vmatpush1.msra.mxu0 0.0
      %1456 = vmatprep.subr.mxu0 0.0
      %1457 = vmatpush1.msra.mxu0 0.0
      %1458 = vmatprep.subr.mxu0 0.0
      %1459 = vmatpush1.msra.mxu0 0.0
      %1460 = vmatprep.subr.mxu0 0.0
      %1461 = vmatpush1.msra.mxu0 0.0
      %1462 = vmatprep.subr.mxu0 0.0
      %1463 = vmatpush1.msra.mxu0 0.0
      %1464 = vmatprep.subr.mxu0 0.0
      %1465 = vmatpush1.msra.mxu0 0.0
      %1466 = vmatprep.subr.mxu0 0.0
      %1467 = vmatpush1.msra.mxu0 0.0
      %1468 = vmatprep.subr.mxu0 0.0
      %1469 = vmatpush1.msra.mxu0 0.0
      %1470 = vmatprep.subr.mxu0 0.0
      %1471 = vmatpush1.msra.mxu0 0.0
      %1472 = vmatprep.subr.mxu0 0.0
      %1473 = vmatpush1.msra.mxu0 0.0
      %1474 = vmatprep.subr.mxu0 0.0
      %1475 = vmatpush1.msra.mxu0 0.0
      %1476 = vmatprep.subr.mxu0 0.0
      %1477 = vmatpush1.msra.mxu0 0.0
      %1478 = vmatprep.subr.mxu0 0.0
      %1479 = vmatpush1.msra.mxu0 0.0
      %1480 = vmatprep.subr.mxu0 0.0
      %1481 = vmatpush1.msra.mxu0 0.0
      %1482 = vmatprep.subr.mxu0 0.0
      %1483 = vmatpush1.msra.mxu0 0.0
      %1484 = vmatprep.subr.mxu0 0.0
      %1485 = vmatpush1.msra.mxu0 0.0
      %1486 = vmatprep.subr.mxu0 0.0
      %1487 = vmatpush1.msra.mxu0 0.0
      %1488 = vmatprep.subr.mxu0 0.0
      %1489 = vmatpush1.msra.mxu0 0.0
      %1490 = vmatprep.subr.mxu0 0.0
      %1491 = vmatpush1.msra.mxu0 0.0
      %1492 = vmatprep.subr.mxu0 0.0
      %1493 = vmatpush1.msra.mxu0 0.0
      %1494 = vmatprep.subr.mxu0 0.0
      %1495 = vmatpush1.msra.mxu0 0.0
      %1496 = vmatprep.subr.mxu0 0.0
      %1497 = vmatpush1.msra.mxu0 0.0
      %1498 = vmatprep.subr.mxu0 0.0
      %1499 = vmatpush1.msra.mxu0 0.0
      %1500 = vmatprep.subr.mxu0 0.0
      %1501 = vmatpush1.msra.mxu0 0.0
      %1502 = vmatprep.subr.mxu0 0.0
      %1503 = vmatpush1.msra.mxu0 0.0
      %1504 = vmatprep.subr.mxu0 0.0
      %1505 = vmatpush1.msra.mxu0 0.0
      %1506 = vmatprep.subr.mxu0 0.0
      %1507 = vmatpush1.msra.mxu0 0.0
      %1508 = vmatprep.subr.mxu0 0.0
      %1509 = vmatpush1.msra.mxu0 0.0
      %1510 = vmatprep.subr.mxu0 0.0
      %1511 = vmatpush1.msra.mxu0 0.0
      %1512 = vmatprep.mubr.f32.mxu0 0.0
      %v1513 = vand.u32 %v1202, 4294901760
      %v1514 = vsub.f32 %v1202, %v1513
      %v1515 = vand.u32 %v1514, 4294901760
      %1516 = vmatmul.mubr.f32.gmra.mrb[0].mxu0 %v1515
      %v1517 = vpop.f32.mrb[0].mxu0
      %v1518 = vadd.f32 %v1442, %v1517
      %v1519 = vpop.f32.mrb[0].mxu0
      %v1520 = vadd.f32 %v1444, %v1519
      %1521 = vdwg.mxu0
      %v1522 = vand.u32 %v1207, 4294901760
      %v1523 = vsub.f32 %v1207, %v1522
      %v1524 = vand.u32 %v1523, 4294901760
      %1525 = vmatprep.subr.mxu0 %v1524
      %v1526 = vand.u32 %v1205, 4294901760
      %v1527 = vsub.f32 %v1205, %v1526
      %v1528 = vand.u32 %v1527, 4294901760
      %1529 = vmatpush1.msra.mxu0 %v1528
      %1530 = vmatprep.subr.mxu0 0.0
      %1531 = vmatpush1.msra.mxu0 0.0
      %1532 = vmatprep.subr.mxu0 0.0
      %1533 = vmatpush1.msra.mxu0 0.0
      %1534 = vmatprep.subr.mxu0 0.0
      %1535 = vmatpush1.msra.mxu0 0.0
      %1536 = vmatprep.subr.mxu0 0.0
      %1537 = vmatpush1.msra.mxu0 0.0
      %1538 = vmatprep.subr.mxu0 0.0
      %1539 = vmatpush1.msra.mxu0 0.0
      %1540 = vmatprep.subr.mxu0 0.0
      %1541 = vmatpush1.msra.mxu0 0.0
      %1542 = vmatprep.subr.mxu0 0.0
      %1543 = vmatpush1.msra.mxu0 0.0
      %1544 = vmatprep.subr.mxu0 0.0
      %1545 = vmatpush1.msra.mxu0 0.0
      %1546 = vmatprep.subr.mxu0 0.0
      %1547 = vmatpush1.msra.mxu0 0.0
      %1548 = vmatprep.subr.mxu0 0.0
      %1549 = vmatpush1.msra.mxu0 0.0
      %1550 = vmatprep.subr.mxu0 0.0
      %1551 = vmatpush1.msra.mxu0 0.0
      %1552 = vmatprep.subr.mxu0 0.0
      %1553 = vmatpush1.msra.mxu0 0.0
      %1554 = vmatprep.subr.mxu0 0.0
      %1555 = vmatpush1.msra.mxu0 0.0
      %1556 = vmatprep.subr.mxu0 0.0
      %1557 = vmatpush1.msra.mxu0 0.0
      %1558 = vmatprep.subr.mxu0 0.0
      %1559 = vmatpush1.msra.mxu0 0.0
      %1560 = vmatprep.subr.mxu0 0.0
      %1561 = vmatpush1.msra.mxu0 0.0
      %1562 = vmatprep.subr.mxu0 0.0
      %1563 = vmatpush1.msra.mxu0 0.0
      %1564 = vmatprep.subr.mxu0 0.0
      %1565 = vmatpush1.msra.mxu0 0.0
      %1566 = vmatprep.subr.mxu0 0.0
      %1567 = vmatpush1.msra.mxu0 0.0
      %1568 = vmatprep.subr.mxu0 0.0
      %1569 = vmatpush1.msra.mxu0 0.0
      %1570 = vmatprep.subr.mxu0 0.0
      %1571 = vmatpush1.msra.mxu0 0.0
      %1572 = vmatprep.subr.mxu0 0.0
      %1573 = vmatpush1.msra.mxu0 0.0
      %1574 = vmatprep.subr.mxu0 0.0
      %1575 = vmatpush1.msra.mxu0 0.0
      %1576 = vmatprep.subr.mxu0 0.0
      %1577 = vmatpush1.msra.mxu0 0.0
      %1578 = vmatprep.subr.mxu0 0.0
      %1579 = vmatpush1.msra.mxu0 0.0
      %1580 = vmatprep.subr.mxu0 0.0
      %1581 = vmatpush1.msra.mxu0 0.0
      %1582 = vmatprep.subr.mxu0 0.0
      %1583 = vmatpush1.msra.mxu0 0.0
      %1584 = vmatprep.subr.mxu0 0.0
      %1585 = vmatpush1.msra.mxu0 0.0
      %1586 = vmatprep.subr.mxu0 0.0
      %1587 = vmatpush1.msra.mxu0 0.0
      %1588 = vmatprep.subr.mxu0 0.0
      %1589 = vmatpush1.msra.mxu0 0.0
      %1590 = vmatprep.subr.mxu0 0.0
      %1591 = vmatpush1.msra.mxu0 0.0
      %1592 = vmatprep.mubr.f32.mxu0 0.0
      %v1593 = vand.u32 %v1202, 4294901760
      %1594 = vmatmul.mubr.f32.gmra.mrb[0].mxu0 %v1593
      %v1595 = vpop.f32.mrb[0].mxu0
      %v1596 = vadd.f32 %v1518, %v1595
      %v1597 = vpop.f32.mrb[0].mxu0
      %v1598 = vadd.f32 %v1520, %v1597
      %1599 = vdwg.mxu0
      %v1600 = vand.u32 %v1207, 4294901760
      %1601 = vmatprep.subr.mxu0 %v1600
      %v1602 = vand.u32 %v1205, 4294901760
      %1603 = vmatpush1.msra.mxu0 %v1602
      %1604 = vmatprep.subr.mxu0 0.0
      %1605 = vmatpush1.msra.mxu0 0.0
      %1606 = vmatprep.subr.mxu0 0.0
      %1607 = vmatpush1.msra.mxu0 0.0
      %1608 = vmatprep.subr.mxu0 0.0
      %1609 = vmatpush1.msra.mxu0 0.0
      %1610 = vmatprep.subr.mxu0 0.0
      %1611 = vmatpush1.msra.mxu0 0.0
      %1612 = vmatprep.subr.mxu0 0.0
      %1613 = vmatpush1.msra.mxu0 0.0
      %1614 = vmatprep.subr.mxu0 0.0
      %1615 = vmatpush1.msra.mxu0 0.0
      %1616 = vmatprep.subr.mxu0 0.0
      %1617 = vmatpush1.msra.mxu0 0.0
      %1618 = vmatprep.subr.mxu0 0.0
      %1619 = vmatpush1.msra.mxu0 0.0
      %1620 = vmatprep.subr.mxu0 0.0
      %1621 = vmatpush1.msra.mxu0 0.0
      %1622 = vmatprep.subr.mxu0 0.0
      %1623 = vmatpush1.msra.mxu0 0.0
      %1624 = vmatprep.subr.mxu0 0.0
      %1625 = vmatpush1.msra.mxu0 0.0
      %1626 = vmatprep.subr.mxu0 0.0
      %1627 = vmatpush1.msra.mxu0 0.0
      %1628 = vmatprep.subr.mxu0 0.0
      %1629 = vmatpush1.msra.mxu0 0.0
      %1630 = vmatprep.subr.mxu0 0.0
      %1631 = vmatpush1.msra.mxu0 0.0
      %1632 = vmatprep.subr.mxu0 0.0
      %1633 = vmatpush1.msra.mxu0 0.0
      %1634 = vmatprep.subr.mxu0 0.0
      %1635 = vmatpush1.msra.mxu0 0.0
      %1636 = vmatprep.subr.mxu0 0.0
      %1637 = vmatpush1.msra.mxu0 0.0
      %1638 = vmatprep.subr.mxu0 0.0
      %1639 = vmatpush1.msra.mxu0 0.0
      %1640 = vmatprep.subr.mxu0 0.0
      %1641 = vmatpush1.msra.mxu0 0.0
      %1642 = vmatprep.subr.mxu0 0.0
      %1643 = vmatpush1.msra.mxu0 0.0
      %1644 = vmatprep.subr.mxu0 0.0
      %1645 = vmatpush1.msra.mxu0 0.0
      %1646 = vmatprep.subr.mxu0 0.0
      %1647 = vmatpush1.msra.mxu0 0.0
      %1648 = vmatprep.subr.mxu0 0.0
      %1649 = vmatpush1.msra.mxu0 0.0
      %1650 = vmatprep.subr.mxu0 0.0
      %1651 = vmatpush1.msra.mxu0 0.0
      %1652 = vmatprep.subr.mxu0 0.0
      %1653 = vmatpush1.msra.mxu0 0.0
      %1654 = vmatprep.subr.mxu0 0.0
      %1655 = vmatpush1.msra.mxu0 0.0
      %1656 = vmatprep.subr.mxu0 0.0
      %1657 = vmatpush1.msra.mxu0 0.0
      %1658 = vmatprep.subr.mxu0 0.0
      %1659 = vmatpush1.msra.mxu0 0.0
      %1660 = vmatprep.subr.mxu0 0.0
      %1661 = vmatpush1.msra.mxu0 0.0
      %1662 = vmatprep.subr.mxu0 0.0
      %1663 = vmatpush1.msra.mxu0 0.0
      %1664 = vmatprep.subr.mxu0 0.0
      %1665 = vmatpush1.msra.mxu0 0.0
      %1666 = vmatprep.mubr.f32.mxu0 0.0
      %v1667 = vand.u32 %v1202, 4294901760
      %1668 = vmatmul.mubr.f32.gmra.mrb[0].mxu0 %v1667
      %v1669 = vpop.f32.mrb[0].mxu0
      %v1670 = vadd.f32 %v1596, %v1669
      %v1671 = vpop.f32.mrb[0].mxu0
      %v1672 = vadd.f32 %v1598, %v1671
      %1673 = vdwg.mxu0
      %vm1674 = vcmp.ge.f32.partialorder %v1670, 0.0
      %vm1675 = vcmp.ge.f32.partialorder %v1672, 0.0
      %v1676 = vmul.f32 %v1670, 0.01
      %v1677 = vmul.f32 %v1672, 0.01
      %v1678 = vsel %vm1674, %v1670, %v1676
      %v1679 = vsel %vm1675, %v1672, %v1677
      %1680 = vst [vmem:[%s224] sm:$0xff] %v1678
      %1681 = vst [vmem:[%s224 + $0x8] sm:$0xff] %v1679
      %p1682 = scmp.lt.s32.totalorder %s16, 1
      %s1683 = scalar_select %p1682, %s16, 1
      %s1684 = smul.addr %s1683, 2
      %s1685 = smul.addr %s1684, 8
      %s1686 = scalar_lea.vmem %s5, %s1685
      // Predicated region
      $region41: #{_lambda_.1} parent=39 // pred_check
        %p1687 = pneg %p144
      $region42: #{_lambda_.1} parent=39 // pred_check_branch
        %1689 = sbr.rel (%p1687) target = $region44
      $region43: #{_lambda_.1} parent=39 // pred_region
        _
      $region44: #{_lambda_.1} parent=39 // pred_fallthru
        _
    $region40: #{_lambda_.1} parent=5 // pred_fallthru
      _
    %p1690 = scmp.le.s32.totalorder 2, %s11
    // Predicated region
    $region45: #{_lambda_.1} parent=5 // pred_check
      %p1691 = pneg %p1690
    $region46: #{_lambda_.1} parent=5 // pred_check_branch
      %1693 = sbr.rel (%p1691) target = $region48
    $region47: #{_lambda_.1} parent=5 // pred_region
      %s1694 = ssub.s32 %s11, 2
      // Predicated region
      $region49: #{_lambda_.1} parent=47 // pred_check
        %p1695 = pneg %p150
      $region50: #{_lambda_.1} parent=47 // pred_check_branch
        %1697 = sbr.rel (%p1695) target = $region52
      $region51: #{_lambda_.1} parent=47 // pred_region
        %p1698 = scmp.lt.s32.totalorder %s17, 1
        %s1699 = scalar_select %p1698, %s17, 1
        %s1700 = smul.addr %s1699, 2
        %s1701 = smul.addr %s1700, 8
        %s1702 = scalar_lea.vmem %s5, %s1701
      $region52: #{_lambda_.1} parent=47 // pred_fallthru
        _
    $region48: #{_lambda_.1} parent=5 // pred_fallthru
      _
  $region6: #{_lambda_.1} parent=0 // loop_footer
    %s15 = sadd.s32 1, %s11
  $region7: #{_lambda_.1} parent=0 // loop_footer_branch
    %10 = sbr.rel target = $region3
  $region8: #{_lambda_.1} parent=0 // loop_exit
    _

</llo_original>
